<compile_context>
chip_gen: v7x
topology: tpu7x:2x2x1
jax: 0.10.0
libtpu: 0.0.40
codegen_flags: <defaults>
</compile_context>

<pallas_src>
import functools
import math

import jax
import jax.numpy as jnp
from jax import lax
from jax.experimental import pallas as pl
from jax.experimental.pallas import tpu as pltpu


def _layernorm(x, gamma, beta, eps=1e-5):
    # PyTorch LayerNorm: biased variance over the last dim, f32 math.
    mean = jnp.mean(x, axis=-1, keepdims=True)
    var = jnp.mean((x - mean) ** 2, axis=-1, keepdims=True)
    return (x - mean) * lax.rsqrt(var + eps) * gamma + beta


def _gelu_exact(z):
    # exact (erf-based) GELU, matching nn.GELU() default
    return 0.5 * z * (1.0 + lax.erf(z * (1.0 / math.sqrt(2.0))))


def vit_block_kernel(x_ref,
                     g1_ref, b1_ref,            # ln1 gamma/beta              (1, D) f32
                     wqkv_ref, bqkv_ref,        # fused in_proj  (D, 3D) bf16, (1, 3D) f32
                     wo_ref, bo_ref,            # out_proj^T     (D, D)  bf16, (1, D)  f32
                     g2_ref, b2_ref,            # ln2 gamma/beta              (1, D) f32
                     w1_ref, bm1_ref,           # mlp dense1^T   (D, M)  bf16, (1, M)  f32
                     w2_ref, bm2_ref,           # mlp dense2^T   (M, D)  bf16, (1, D)  f32
                     o_ref,
                     attn_ref,                  # VMEM scratch (bt*S, D) f32 (head concat)
                     *, num_heads, mlp_chunk):
    bt, S, D = x_ref.shape
    H = num_heads
    dh = D // H
    scale = 1.0 / math.sqrt(dh)
    rows = bt * S

    # Flatten batch-tile rows so the big matmuls have M = bt*S rows.
    x = x_ref[...].reshape(rows, D).astype(jnp.float32)

    # ---- x = x + MHA(ln1(x), ln1(x), ln1(x)) ------------------------------
    # (attention dropout p=0.1 -> identity in eval mode)
    h1 = _layernorm(x, g1_ref[0], b1_ref[0])
    qkv = jnp.dot(h1.astype(jnp.bfloat16), wqkv_ref[...],
                  preferred_element_type=jnp.float32) + bqkv_ref[0]

    # Heads are handled as a batch dim of rank-3 einsums (no per-head 64-lane slices,
    # no bt*H unrolled matmul bodies).  Small static loop over the batch tile only.
    for b in range(bt):
        r0 = b * S

        def _split_heads(t2d):
            # (S, D) f32 -> (H, S, dh) bf16  (transpose in f32, then cast for the MXU)
            return pltpu.einshape("shd->hsd", t2d.reshape(S, H, dh)).astype(jnp.bfloat16)

        qh = _split_heads(qkv[r0:r0 + S, 0 * D:1 * D])
        kh = _split_heads(qkv[r0:r0 + S, 1 * D:2 * D])
        vh = _split_heads(qkv[r0:r0 + S, 2 * D:3 * D])

        s = jnp.einsum('hqd,hkd->hqk', qh, kh,
                       preferred_element_type=jnp.float32) * scale
        s = s - jnp.max(s, axis=-1, keepdims=True)
        p = jnp.exp(s)
        inv = pl.reciprocal(jnp.sum(p, axis=-1, keepdims=True), approx=True)
        hv = jnp.einsum('hqk,hkd->hqd', p.astype(jnp.bfloat16), vh,
                        preferred_element_type=jnp.float32) * inv          # (H, S, dh)

        # concat heads back to (S, D) and park in VMEM (bounds live ranges)
        attn_ref[b * S:(b + 1) * S, :] = pltpu.einshape("hsd->shd", hv).reshape(S, D)

    # single K=D out-projection, residual and out-proj bias folded in one pass
    x1 = x + jnp.dot(attn_ref[...].astype(jnp.bfloat16), wo_ref[...],
                     preferred_element_type=jnp.float32) + bo_ref[0]

    # ---- x = x + MLP(ln2(x)) ----------------------------------------------
    # (dropout1 / dropout2 p=0.5 -> identity in eval mode)
    h2 = _layernorm(x1, g2_ref[0], b2_ref[0]).astype(jnp.bfloat16)
    M = w1_ref.shape[1]
    mc = mlp_chunk
    acc = x1 + bm2_ref[0]                      # residual + dense2 bias, added once
    for c in range(M // mc):                   # small static chunk loop (M/mc <= ~4)
        c0 = c * mc
        z = jnp.dot(h2, w1_ref[:, c0:c0 + mc],
                    preferred_element_type=jnp.float32) + bm1_ref[0, c0:c0 + mc]
        z = _gelu_exact(z)
        acc = acc + jnp.dot(z.astype(jnp.bfloat16), w2_ref[c0:c0 + mc, :],
                            preferred_element_type=jnp.float32)

    o_ref[...] = acc.reshape(bt, S, D).astype(o_ref.dtype)


# ----------------------------------------------------------------------------
# generation-aware tiling helpers
# ----------------------------------------------------------------------------
def _device_info():
    """(per-core VMEM bytes, TensorCores sharing the grid)."""
    try:
        kind = jax.devices()[0].device_kind.lower()
    except Exception:
        kind = ""
    if "v7" in kind:
        return 64 * 2**20, 2           # v7x: 64 MiB / TC, 2 TCs per chip
    if "v4" in kind or "v5p" in kind:
        return 128 * 2**20, 2          # megacore
    if "v5" in kind or "v6" in kind:
        return 128 * 2**20, 1          # v5e / v6e: single TC, 128 MiB
    return 64 * 2**20, 1               # unknown: conservative


def _pick_mlp_chunk(M):
    if M <= 1024:
        return M
    for mc in (1024, 896, 768, 640, 512, 384, 256, 128):
        if M % mc == 0:
            return mc
    return M


def _step_vmem_bytes(bt, S, D, M, H, mc):
    """Rough per-grid-step VMEM footprint estimate (bytes)."""
    f32, bf16 = 4, 2
    rows = bt * S
    dh = D // H
    io = 2 * 2 * rows * D * f32                              # x in + out, double-buffered
    weights = (4 * D * D + 2 * D * M) * bf16 + (10 * D + M) * f32   # single-buffered
    scratch = rows * D * f32                                 # head-concat scratch
    live = (rows * 3 * D * f32                               # qkv
            + 3 * rows * D * f32                             # x / x1 / h
            + 2 * H * S * S * f32                            # scores + probs (one batch elem)
            + 3 * H * S * dh * f32                           # split q/k/v
            + 2 * rows * mc * f32)                           # MLP chunk + gelu
    return io + weights + scratch + live


def _pick_batch_tile(B, S, D, M, H, mc, vmem_bytes, num_cores):
    budget = int(vmem_bytes * 0.7)
    for bt in (8, 4, 2, 1):
        if B % bt:
            continue
        steps = B // bt
        # Only reserve >=num_cores grid steps when there is actually a second core;
        # on single-core chips take the biggest tile that fits (fewer, fatter steps).
        if num_cores > 1 and steps < num_cores:
            continue
        if _step_vmem_bytes(bt, S, D, M, H, mc) <= budget:
            return bt
    return 1


# ----------------------------------------------------------------------------
# wrapper
# ----------------------------------------------------------------------------
def vit_block(x, params, *, num_heads, batch_tile=None):
    B, S, D = x.shape
    M = params["w1_t"].shape[1]
    assert D % num_heads == 0

    vmem_cap, num_cores = _device_info()
    mc = _pick_mlp_chunk(M)
    bt = batch_tile if batch_tile is not None else _pick_batch_tile(
        B, S, D, M, num_heads, mc, vmem_cap, num_cores)
    assert B % bt == 0 and M % mc == 0

    # grid-invariant operands -> single buffer (no pointless double-buffering)
    const2d = lambda r, c: pl.BlockSpec((r, c), lambda i: (0, 0),
                                        pipeline_mode=pl.Buffered(1))
    x_spec = pl.BlockSpec((bt, S, D), lambda i: (i, 0, 0))

    in_specs = [
        x_spec,
        const2d(1, D), const2d(1, D),            # ln1
        const2d(D, 3 * D), const2d(1, 3 * D),    # fused qkv proj
        const2d(D, D), const2d(1, D),            # out proj
        const2d(1, D), const2d(1, D),            # ln2
        const2d(D, M), const2d(1, M),            # dense1
        const2d(M, D), const2d(1, D),            # dense2
    ]

    # Advisory cost for XLA scheduling around the custom call.
    flops = (2 * B * S * D * 3 * D          # fused QKV projection
             + 4 * B * S * S * D            # QK^T + PV (all heads)
             + 2 * B * S * D * D            # out projection
             + 4 * B * S * D * M)           # MLP dense1 + dense2
    transcendentals = B * num_heads * S * S + B * S * M + B * num_heads * S
    bytes_weights = 2 * (4 * D * D + 2 * D * M)               # bf16 matrices
    bytes_small = 4 * (10 * D + M)                            # biases + LN params (f32)
    bytes_accessed = 2 * B * S * D * x.dtype.itemsize + bytes_weights + bytes_small

    # v7x: cap well below the 64 MiB physical VMEM; v5e/v6e: raise above the scoped default.
    vmem_limit = min(100 * 2**20, int(vmem_cap * 7 // 8))

    kernel = functools.partial(vit_block_kernel, num_heads=num_heads, mlp_chunk=mc)
    return pl.pallas_call(
        kernel,
        out_shape=jax.ShapeDtypeStruct((B, S, D), x.dtype),
        grid_spec=pltpu.PrefetchScalarGridSpec(
            num_scalar_prefetch=0,
            grid=(B // bt,),
            in_specs=in_specs,
            out_specs=x_spec,
            scratch_shapes=[pltpu.VMEM((bt * S, D), jnp.float32)],
        ),
        compiler_params=pltpu.CompilerParams(
            dimension_semantics=("parallel",),
            vmem_limit_bytes=vmem_limit,
        ),
        cost_estimate=pl.CostEstimate(
            flops=flops,
            transcendentals=transcendentals,
            bytes_accessed=bytes_accessed,
        ),
    )(
        x,
        params["g1"], params["b1"],
        params["wqkv_t"], params["bqkv"],
        params["wo_t"], params["bo"],
        params["g2"], params["b2"],
        params["w1_t"], params["bm1"],
        params["w2_t"], params["bm2"],
    )


def make_params(key, D, M):
    """Deterministic synthetic parameters (shapes follow ViTBlock.__init__).

    Weight matrices are pre-transposed (kernel computes y = x @ W^T) and stored
    in bfloat16; biases and LayerNorm params stay f32.
    """
    ks = jax.random.split(key, 8)
    n = lambda k, shape, s=0.02: (s * jax.random.normal(k, shape)).astype(jnp.float32)
    bf = lambda a: a.astype(jnp.bfloat16)

    in_proj_w = n(ks[0], (3 * D, D))     # nn.MultiheadAttention in_proj_weight (3D, D)
    in_proj_b = n(ks[1], (1, 3 * D))
    out_proj_w = n(ks[2], (D, D))
    w1 = n(ks[3], (M, D))
    b1m = n(ks[4], (1, M))
    w2 = n(ks[5], (D, M))
    b2m = n(ks[6], (1, D))

    return {
        # LayerNorm: weight=1, bias=0 (PyTorch default init)
        "g1": jnp.ones((1, D), jnp.float32), "b1": jnp.zeros((1, D), jnp.float32),
        "g2": jnp.ones((1, D), jnp.float32), "b2": jnp.zeros((1, D), jnp.float32),
        # fused QKV: (in_proj_weight)^T -> (D, 3D), columns laid out as [q | k | v]
        "wqkv_t": bf(in_proj_w.T),
        "bqkv": in_proj_b,
        # out_proj (bias defaults to zeros in PyTorch)
        "wo_t": bf(out_proj_w.T), "bo": jnp.zeros((1, D), jnp.float32),
        # ViTMLP: dense1 (D -> M), dense2 (M -> D)
        "w1_t": bf(w1.T), "bm1": b1m,
        "w2_t": bf(w2.T), "bm2": b2m,
    }


if __name__ == "__main__":
    B, S, D = 2, 8, 32          # batch, seq, num_hidden (= norm_shape)
    M = 64                      # mlp_num_hidden
    H = 4                       # num_heads

    key = jax.random.PRNGKey(0)
    kx, kp = jax.random.split(key)
    x = jax.random.normal(kx, (B, S, D), dtype=jnp.float32)
    params = make_params(kp, D, M)

    out = vit_block(x, params, num_heads=H)
    jax.block_until_ready(out)
    assert out.shape == (B, S, D)
    print("KERNEL_OK")
</pallas_src>

<mosaic_0001>
module attributes {stable_mosaic.version = 11 : i64} {
  func.func @vit_block_kernel(%arg0: i32, %arg1: memref<2x8x32xf32, #tpu.memory_space<vmem>>, %arg2: memref<1x32xf32, #tpu.memory_space<vmem>>, %arg3: memref<1x32xf32, #tpu.memory_space<vmem>>, %arg4: memref<32x96xbf16, #tpu.memory_space<vmem>>, %arg5: memref<1x96xf32, #tpu.memory_space<vmem>>, %arg6: memref<32x32xbf16, #tpu.memory_space<vmem>>, %arg7: memref<1x32xf32, #tpu.memory_space<vmem>>, %arg8: memref<1x32xf32, #tpu.memory_space<vmem>>, %arg9: memref<1x32xf32, #tpu.memory_space<vmem>>, %arg10: memref<32x64xbf16, #tpu.memory_space<vmem>>, %arg11: memref<1x64xf32, #tpu.memory_space<vmem>>, %arg12: memref<64x32xbf16, #tpu.memory_space<vmem>>, %arg13: memref<1x32xf32, #tpu.memory_space<vmem>>, %arg14: memref<2x8x32xf32, #tpu.memory_space<vmem>>, %arg15: memref<16x32xf32, #tpu.memory_space<vmem>>) attributes {dimension_semantics = [#tpu.dimension_semantics<parallel>], iteration_bounds = array<i64: 1>, scalar_prefetch = 0 : i64, scratch_operands = 1 : i64, tpu.core_type = #tpu.core_type<tc>, window_params = [{transform_indices = @transform_0, window_bounds = array<i64: 2, 8, 32>}, {pipeline_mode = #tpu.pipeline_mode<synchronous>, transform_indices = @transform_1, window_bounds = array<i64: 1, 32>}, {pipeline_mode = #tpu.pipeline_mode<synchronous>, transform_indices = @transform_2, window_bounds = array<i64: 1, 32>}, {pipeline_mode = #tpu.pipeline_mode<synchronous>, transform_indices = @transform_3, window_bounds = array<i64: 32, 96>}, {pipeline_mode = #tpu.pipeline_mode<synchronous>, transform_indices = @transform_4, window_bounds = array<i64: 1, 96>}, {pipeline_mode = #tpu.pipeline_mode<synchronous>, transform_indices = @transform_5, window_bounds = array<i64: 32, 32>}, {pipeline_mode = #tpu.pipeline_mode<synchronous>, transform_indices = @transform_6, window_bounds = array<i64: 1, 32>}, {pipeline_mode = #tpu.pipeline_mode<synchronous>, transform_indices = @transform_7, window_bounds = array<i64: 1, 32>}, {pipeline_mode = #tpu.pipeline_mode<synchronous>, transform_indices = @transform_8, window_bounds = array<i64: 1, 32>}, {pipeline_mode = #tpu.pipeline_mode<synchronous>, transform_indices = @transform_9, window_bounds = array<i64: 32, 64>}, {pipeline_mode = #tpu.pipeline_mode<synchronous>, transform_indices = @transform_10, window_bounds = array<i64: 1, 64>}, {pipeline_mode = #tpu.pipeline_mode<synchronous>, transform_indices = @transform_11, window_bounds = array<i64: 64, 32>}, {pipeline_mode = #tpu.pipeline_mode<synchronous>, transform_indices = @transform_12, window_bounds = array<i64: 1, 32>}, {transform_indices = @transform_13, window_bounds = array<i64: 2, 8, 32>}]} {
    %c0 = arith.constant 0 : index
    %c0_0 = arith.constant 0 : index
    %c0_1 = arith.constant 0 : index
    %0 = vector.load %arg1[%c0, %c0_0, %c0_1] : memref<2x8x32xf32, #tpu.memory_space<vmem>>, vector<2x8x32xf32>
    %1 = vector.shape_cast %0 : vector<2x8x32xf32> to vector<16x32xf32>
    %c0_2 = arith.constant 0 : index
    %c0_3 = arith.constant 0 : index
    %2 = vector.load %arg2[%c0_2, %c0_3] : memref<1x32xf32, #tpu.memory_space<vmem>>, vector<1x32xf32>
    %3 = vector.shape_cast %2 : vector<1x32xf32> to vector<32xf32>
    %c0_4 = arith.constant 0 : index
    %c0_5 = arith.constant 0 : index
    %4 = vector.load %arg3[%c0_4, %c0_5] : memref<1x32xf32, #tpu.memory_space<vmem>>, vector<1x32xf32>
    %5 = vector.shape_cast %4 : vector<1x32xf32> to vector<32xf32>
    %cst = arith.constant dense<0.000000e+00> : vector<16xf32>
    %6 = vector.multi_reduction <add>, %1, %cst [1] : vector<16x32xf32> to vector<16xf32>
    %7 = vector.shape_cast %6 : vector<16xf32> to vector<16x1xf32>
    %cst_6 = arith.constant 3.200000e+01 : f32
    %8 = vector.broadcast %cst_6 : f32 to vector<16x1xf32>
    %9 = arith.divf %7, %8 : vector<16x1xf32>
    %10 = vector.broadcast %9 : vector<16x1xf32> to vector<16x32xf32>
    %11 = arith.subf %1, %10 : vector<16x32xf32>
    %12 = arith.mulf %11, %11 : vector<16x32xf32>
    %cst_7 = arith.constant dense<0.000000e+00> : vector<16xf32>
    %13 = vector.multi_reduction <add>, %12, %cst_7 [1] : vector<16x32xf32> to vector<16xf32>
    %14 = vector.shape_cast %13 : vector<16xf32> to vector<16x1xf32>
    %cst_8 = arith.constant 3.200000e+01 : f32
    %15 = vector.broadcast %cst_8 : f32 to vector<16x1xf32>
    %16 = arith.divf %14, %15 : vector<16x1xf32>
    %17 = vector.broadcast %9 : vector<16x1xf32> to vector<16x32xf32>
    %18 = arith.subf %1, %17 : vector<16x32xf32>
    %cst_9 = arith.constant 9.99999974E-6 : f32
    %19 = vector.broadcast %cst_9 : f32 to vector<16x1xf32>
    %20 = arith.addf %16, %19 : vector<16x1xf32>
    %21 = math.rsqrt %20 : vector<16x1xf32>
    %22 = vector.broadcast %21 : vector<16x1xf32> to vector<16x32xf32>
    %23 = arith.mulf %18, %22 : vector<16x32xf32>
    %24 = vector.shape_cast %3 : vector<32xf32> to vector<1x32xf32>
    %25 = vector.broadcast %24 : vector<1x32xf32> to vector<16x32xf32>
    %26 = arith.mulf %23, %25 : vector<16x32xf32>
    %27 = vector.shape_cast %5 : vector<32xf32> to vector<1x32xf32>
    %28 = vector.broadcast %27 : vector<1x32xf32> to vector<16x32xf32>
    %29 = arith.addf %26, %28 : vector<16x32xf32>
    %30 = arith.truncf %29 : vector<16x32xf32> to vector<16x32xbf16>
    %c0_10 = arith.constant 0 : index
    %c0_11 = arith.constant 0 : index
    %31 = vector.load %arg4[%c0_10, %c0_11] : memref<32x96xbf16, #tpu.memory_space<vmem>>, vector<32x96xbf16>
    %cst_12 = arith.constant dense<0.000000e+00> : vector<16x96xf32>
    %32 = tpu.matmul %30, %31, %cst_12 {dimension_numbers = #tpu.dot_dimension_numbers<[1], [0], [0], [1], [0, 0, 1, 1], [], []>} : vector<16x32xbf16>, vector<32x96xbf16>, vector<16x96xf32> -> vector<16x96xf32>
    %c0_13 = arith.constant 0 : index
    %c0_14 = arith.constant 0 : index
    %33 = vector.load %arg5[%c0_13, %c0_14] : memref<1x96xf32, #tpu.memory_space<vmem>>, vector<1x96xf32>
    %34 = vector.shape_cast %33 : vector<1x96xf32> to vector<96xf32>
    %35 = vector.shape_cast %34 : vector<96xf32> to vector<1x96xf32>
    %36 = vector.broadcast %35 : vector<1x96xf32> to vector<16x96xf32>
    %37 = arith.addf %32, %36 : vector<16x96xf32>
    %38 = vector.extract_strided_slice %37 {offsets = [0, 0], sizes = [8, 32], strides = [1, 1]} : vector<16x96xf32> to vector<8x32xf32>
    %39 = vector.shape_cast %38 : vector<8x32xf32> to vector<8x4x8xf32>
    %40 = tpu.transpose %39, [1, 0, 2] : vector<8x4x8xf32> -> vector<4x8x8xf32>
    %41 = arith.truncf %40 : vector<4x8x8xf32> to vector<4x8x8xbf16>
    %42 = vector.extract_strided_slice %37 {offsets = [0, 32], sizes = [8, 32], strides = [1, 1]} : vector<16x96xf32> to vector<8x32xf32>
    %43 = vector.shape_cast %42 : vector<8x32xf32> to vector<8x4x8xf32>
    %44 = tpu.transpose %43, [1, 0, 2] : vector<8x4x8xf32> -> vector<4x8x8xf32>
    %45 = arith.truncf %44 : vector<4x8x8xf32> to vector<4x8x8xbf16>
    %46 = vector.extract_strided_slice %37 {offsets = [0, 64], sizes = [8, 32], strides = [1, 1]} : vector<16x96xf32> to vector<8x32xf32>
    %47 = vector.shape_cast %46 : vector<8x32xf32> to vector<8x4x8xf32>
    %48 = tpu.transpose %47, [1, 0, 2] : vector<8x4x8xf32> -> vector<4x8x8xf32>
    %49 = arith.truncf %48 : vector<4x8x8xf32> to vector<4x8x8xbf16>
    "tpu.trace_start"() <{level = 10 : i32, message = "hqd,hkd->hqk"}> : () -> ()
    %cst_15 = arith.constant dense<0.000000e+00> : vector<4x8x8xf32>
    %50 = tpu.matmul %41, %45, %cst_15 {dimension_numbers = #tpu.dot_dimension_numbers<[2], [2], [1], [1], [0, 0, 0, 1, 1, 1], [0], [0]>} : vector<4x8x8xbf16>, vector<4x8x8xbf16>, vector<4x8x8xf32> -> vector<4x8x8xf32>
    "tpu.trace_stop"() : () -> ()
    %cst_16 = arith.constant 0.353553385 : f32
    %51 = vector.broadcast %cst_16 : f32 to vector<4x8x8xf32>
    %52 = arith.mulf %50, %51 : vector<4x8x8xf32>
    %cst_17 = arith.constant dense<0xFF800000> : vector<4x8xf32>
    %53 = vector.multi_reduction <maximumf>, %52, %cst_17 [2] : vector<4x8x8xf32> to vector<4x8xf32>
    %54 = vector.shape_cast %53 : vector<4x8xf32> to vector<4x8x1xf32>
    %55 = vector.broadcast %54 : vector<4x8x1xf32> to vector<4x8x8xf32>
    %56 = arith.subf %52, %55 : vector<4x8x8xf32>
    %57 = math.exp %56 : vector<4x8x8xf32>
    %cst_18 = arith.constant dense<0.000000e+00> : vector<4x8xf32>
    %58 = vector.multi_reduction <add>, %57, %cst_18 [2] : vector<4x8x8xf32> to vector<4x8xf32>
    %59 = vector.shape_cast %58 : vector<4x8xf32> to vector<4x8x1xf32>
    %60 = tpu.reciprocal %59 {approx = true} : vector<4x8x1xf32> -> vector<4x8x1xf32>
    %61 = arith.truncf %57 : vector<4x8x8xf32> to vector<4x8x8xbf16>
    "tpu.trace_start"() <{level = 10 : i32, message = "hqk,hkd->hqd"}> : () -> ()
    %cst_19 = arith.constant dense<0.000000e+00> : vector<4x8x8xf32>
    %62 = tpu.matmul %61, %49, %cst_19 {dimension_numbers = #tpu.dot_dimension_numbers<[2], [1], [1], [2], [0, 0, 0, 1, 1, 2], [0], [0]>} : vector<4x8x8xbf16>, vector<4x8x8xbf16>, vector<4x8x8xf32> -> vector<4x8x8xf32>
    "tpu.trace_stop"() : () -> ()
    %63 = vector.broadcast %60 : vector<4x8x1xf32> to vector<4x8x8xf32>
    %64 = arith.mulf %62, %63 : vector<4x8x8xf32>
    %65 = tpu.transpose %64, [1, 0, 2] : vector<4x8x8xf32> -> vector<8x4x8xf32>
    %66 = vector.shape_cast %65 : vector<8x4x8xf32> to vector<8x32xf32>
    %c0_20 = arith.constant 0 : index
    %c0_21 = arith.constant 0 : index
    %67 = vector.load %arg15[%c0_20, %c0_21] : memref<16x32xf32, #tpu.memory_space<vmem>>, vector<8x32xf32>
    tpu.vector_store %arg15[%c0_20, %c0_21], %66 {strides = array<i32>} : memref<16x32xf32, #tpu.memory_space<vmem>>, vector<8x32xf32>,
    %68 = vector.extract_strided_slice %37 {offsets = [8, 0], sizes = [8, 32], strides = [1, 1]} : vector<16x96xf32> to vector<8x32xf32>
    %69 = vector.shape_cast %68 : vector<8x32xf32> to vector<8x4x8xf32>
    %70 = tpu.transpose %69, [1, 0, 2] : vector<8x4x8xf32> -> vector<4x8x8xf32>
    %71 = arith.truncf %70 : vector<4x8x8xf32> to vector<4x8x8xbf16>
    %72 = vector.extract_strided_slice %37 {offsets = [8, 32], sizes = [8, 32], strides = [1, 1]} : vector<16x96xf32> to vector<8x32xf32>
    %73 = vector.shape_cast %72 : vector<8x32xf32> to vector<8x4x8xf32>
    %74 = tpu.transpose %73, [1, 0, 2] : vector<8x4x8xf32> -> vector<4x8x8xf32>
    %75 = arith.truncf %74 : vector<4x8x8xf32> to vector<4x8x8xbf16>
    %76 = vector.extract_strided_slice %37 {offsets = [8, 64], sizes = [8, 32], strides = [1, 1]} : vector<16x96xf32> to vector<8x32xf32>
    %77 = vector.shape_cast %76 : vector<8x32xf32> to vector<8x4x8xf32>
    %78 = tpu.transpose %77, [1, 0, 2] : vector<8x4x8xf32> -> vector<4x8x8xf32>
    %79 = arith.truncf %78 : vector<4x8x8xf32> to vector<4x8x8xbf16>
    "tpu.trace_start"() <{level = 10 : i32, message = "hqd,hkd->hqk"}> : () -> ()
    %cst_22 = arith.constant dense<0.000000e+00> : vector<4x8x8xf32>
    %80 = tpu.matmul %71, %75, %cst_22 {dimension_numbers = #tpu.dot_dimension_numbers<[2], [2], [1], [1], [0, 0, 0, 1, 1, 1], [0], [0]>} : vector<4x8x8xbf16>, vector<4x8x8xbf16>, vector<4x8x8xf32> -> vector<4x8x8xf32>
    "tpu.trace_stop"() : () -> ()
    %cst_23 = arith.constant 0.353553385 : f32
    %81 = vector.broadcast %cst_23 : f32 to vector<4x8x8xf32>
    %82 = arith.mulf %80, %81 : vector<4x8x8xf32>
    %cst_24 = arith.constant dense<0xFF800000> : vector<4x8xf32>
    %83 = vector.multi_reduction <maximumf>, %82, %cst_24 [2] : vector<4x8x8xf32> to vector<4x8xf32>
    %84 = vector.shape_cast %83 : vector<4x8xf32> to vector<4x8x1xf32>
    %85 = vector.broadcast %84 : vector<4x8x1xf32> to vector<4x8x8xf32>
    %86 = arith.subf %82, %85 : vector<4x8x8xf32>
    %87 = math.exp %86 : vector<4x8x8xf32>
    %cst_25 = arith.constant dense<0.000000e+00> : vector<4x8xf32>
    %88 = vector.multi_reduction <add>, %87, %cst_25 [2] : vector<4x8x8xf32> to vector<4x8xf32>
    %89 = vector.shape_cast %88 : vector<4x8xf32> to vector<4x8x1xf32>
    %90 = tpu.reciprocal %89 {approx = true} : vector<4x8x1xf32> -> vector<4x8x1xf32>
    %91 = arith.truncf %87 : vector<4x8x8xf32> to vector<4x8x8xbf16>
    "tpu.trace_start"() <{level = 10 : i32, message = "hqk,hkd->hqd"}> : () -> ()
    %cst_26 = arith.constant dense<0.000000e+00> : vector<4x8x8xf32>
    %92 = tpu.matmul %91, %79, %cst_26 {dimension_numbers = #tpu.dot_dimension_numbers<[2], [1], [1], [2], [0, 0, 0, 1, 1, 2], [0], [0]>} : vector<4x8x8xbf16>, vector<4x8x8xbf16>, vector<4x8x8xf32> -> vector<4x8x8xf32>
    "tpu.trace_stop"() : () -> ()
    %93 = vector.broadcast %90 : vector<4x8x1xf32> to vector<4x8x8xf32>
    %94 = arith.mulf %92, %93 : vector<4x8x8xf32>
    %95 = tpu.transpose %94, [1, 0, 2] : vector<4x8x8xf32> -> vector<8x4x8xf32>
    %96 = vector.shape_cast %95 : vector<8x4x8xf32> to vector<8x32xf32>
    %c8 = arith.constant 8 : index
    %c0_27 = arith.constant 0 : index
    %97 = vector.load %arg15[%c8, %c0_27] : memref<16x32xf32, #tpu.memory_space<vmem>>, vector<8x32xf32>
    tpu.vector_store %arg15[%c8, %c0_27], %96 {strides = array<i32>} : memref<16x32xf32, #tpu.memory_space<vmem>>, vector<8x32xf32>,
    %c0_28 = arith.constant 0 : index
    %c0_29 = arith.constant 0 : index
    %98 = vector.load %arg15[%c0_28, %c0_29] : memref<16x32xf32, #tpu.memory_space<vmem>>, vector<16x32xf32>
    %99 = arith.truncf %98 : vector<16x32xf32> to vector<16x32xbf16>
    %c0_30 = arith.constant 0 : index
    %c0_31 = arith.constant 0 : index
    %100 = vector.load %arg6[%c0_30, %c0_31] : memref<32x32xbf16, #tpu.memory_space<vmem>>, vector<32x32xbf16>
    %cst_32 = arith.constant dense<0.000000e+00> : vector<16x32xf32>
    %101 = tpu.matmul %99, %100, %cst_32 {dimension_numbers = #tpu.dot_dimension_numbers<[1], [0], [0], [1], [0, 0, 1, 1], [], []>} : vector<16x32xbf16>, vector<32x32xbf16>, vector<16x32xf32> -> vector<16x32xf32>
    %102 = arith.addf %1, %101 : vector<16x32xf32>
    %c0_33 = arith.constant 0 : index
    %c0_34 = arith.constant 0 : index
    %103 = vector.load %arg7[%c0_33, %c0_34] : memref<1x32xf32, #tpu.memory_space<vmem>>, vector<1x32xf32>
    %104 = vector.shape_cast %103 : vector<1x32xf32> to vector<32xf32>
    %105 = vector.shape_cast %104 : vector<32xf32> to vector<1x32xf32>
    %106 = vector.broadcast %105 : vector<1x32xf32> to vector<16x32xf32>
    %107 = arith.addf %102, %106 : vector<16x32xf32>
    %c0_35 = arith.constant 0 : index
    %c0_36 = arith.constant 0 : index
    %108 = vector.load %arg8[%c0_35, %c0_36] : memref<1x32xf32, #tpu.memory_space<vmem>>, vector<1x32xf32>
    %109 = vector.shape_cast %108 : vector<1x32xf32> to vector<32xf32>
    %c0_37 = arith.constant 0 : index
    %c0_38 = arith.constant 0 : index
    %110 = vector.load %arg9[%c0_37, %c0_38] : memref<1x32xf32, #tpu.memory_space<vmem>>, vector<1x32xf32>
    %111 = vector.shape_cast %110 : vector<1x32xf32> to vector<32xf32>
    %cst_39 = arith.constant dense<0.000000e+00> : vector<16xf32>
    %112 = vector.multi_reduction <add>, %107, %cst_39 [1] : vector<16x32xf32> to vector<16xf32>
    %113 = vector.shape_cast %112 : vector<16xf32> to vector<16x1xf32>
    %cst_40 = arith.constant 3.200000e+01 : f32
    %114 = vector.broadcast %cst_40 : f32 to vector<16x1xf32>
    %115 = arith.divf %113, %114 : vector<16x1xf32>
    %116 = vector.broadcast %115 : vector<16x1xf32> to vector<16x32xf32>
    %117 = arith.subf %107, %116 : vector<16x32xf32>
    %118 = arith.mulf %117, %117 : vector<16x32xf32>
    %cst_41 = arith.constant dense<0.000000e+00> : vector<16xf32>
    %119 = vector.multi_reduction <add>, %118, %cst_41 [1] : vector<16x32xf32> to vector<16xf32>
    %120 = vector.shape_cast %119 : vector<16xf32> to vector<16x1xf32>
    %cst_42 = arith.constant 3.200000e+01 : f32
    %121 = vector.broadcast %cst_42 : f32 to vector<16x1xf32>
    %122 = arith.divf %120, %121 : vector<16x1xf32>
    %123 = vector.broadcast %115 : vector<16x1xf32> to vector<16x32xf32>
    %124 = arith.subf %107, %123 : vector<16x32xf32>
    %cst_43 = arith.constant 9.99999974E-6 : f32
    %125 = vector.broadcast %cst_43 : f32 to vector<16x1xf32>
    %126 = arith.addf %122, %125 : vector<16x1xf32>
    %127 = math.rsqrt %126 : vector<16x1xf32>
    %128 = vector.broadcast %127 : vector<16x1xf32> to vector<16x32xf32>
    %129 = arith.mulf %124, %128 : vector<16x32xf32>
    %130 = vector.shape_cast %109 : vector<32xf32> to vector<1x32xf32>
    %131 = vector.broadcast %130 : vector<1x32xf32> to vector<16x32xf32>
    %132 = arith.mulf %129, %131 : vector<16x32xf32>
    %133 = vector.shape_cast %111 : vector<32xf32> to vector<1x32xf32>
    %134 = vector.broadcast %133 : vector<1x32xf32> to vector<16x32xf32>
    %135 = arith.addf %132, %134 : vector<16x32xf32>
    %136 = arith.truncf %135 : vector<16x32xf32> to vector<16x32xbf16>
    %c0_44 = arith.constant 0 : index
    %c0_45 = arith.constant 0 : index
    %137 = vector.load %arg13[%c0_44, %c0_45] : memref<1x32xf32, #tpu.memory_space<vmem>>, vector<1x32xf32>
    %138 = vector.shape_cast %137 : vector<1x32xf32> to vector<32xf32>
    %139 = vector.shape_cast %138 : vector<32xf32> to vector<1x32xf32>
    %140 = vector.broadcast %139 : vector<1x32xf32> to vector<16x32xf32>
    %141 = arith.addf %107, %140 : vector<16x32xf32>
    %c0_46 = arith.constant 0 : index
    %c0_47 = arith.constant 0 : index
    %142 = vector.load %arg10[%c0_46, %c0_47] : memref<32x64xbf16, #tpu.memory_space<vmem>>, vector<32x64xbf16>
    %cst_48 = arith.constant dense<0.000000e+00> : vector<16x64xf32>
    %143 = tpu.matmul %136, %142, %cst_48 {dimension_numbers = #tpu.dot_dimension_numbers<[1], [0], [0], [1], [0, 0, 1, 1], [], []>} : vector<16x32xbf16>, vector<32x64xbf16>, vector<16x64xf32> -> vector<16x64xf32>
    %c0_49 = arith.constant 0 : index
    %c0_50 = arith.constant 0 : index
    %144 = vector.load %arg11[%c0_49, %c0_50] : memref<1x64xf32, #tpu.memory_space<vmem>>, vector<1x64xf32>
    %145 = vector.shape_cast %144 : vector<1x64xf32> to vector<64xf32>
    %146 = vector.shape_cast %145 : vector<64xf32> to vector<1x64xf32>
    %147 = vector.broadcast %146 : vector<1x64xf32> to vector<16x64xf32>
    %148 = arith.addf %143, %147 : vector<16x64xf32>
    %cst_51 = arith.constant 5.000000e-01 : f32
    %149 = vector.broadcast %cst_51 : f32 to vector<16x64xf32>
    %150 = arith.mulf %149, %148 : vector<16x64xf32>
    %cst_52 = arith.constant 0.707106769 : f32
    %151 = vector.broadcast %cst_52 : f32 to vector<16x64xf32>
    %152 = arith.mulf %148, %151 : vector<16x64xf32>
    %153 = math.erf %152 : vector<16x64xf32>
    %cst_53 = arith.constant 1.000000e+00 : f32
    %154 = vector.broadcast %cst_53 : f32 to vector<16x64xf32>
    %155 = arith.addf %154, %153 : vector<16x64xf32>
    %156 = arith.mulf %150, %155 : vector<16x64xf32>
    %157 = arith.truncf %156 : vector<16x64xf32> to vector<16x64xbf16>
    %c0_54 = arith.constant 0 : index
    %c0_55 = arith.constant 0 : index
    %158 = vector.load %arg12[%c0_54, %c0_55] : memref<64x32xbf16, #tpu.memory_space<vmem>>, vector<64x32xbf16>
    %cst_56 = arith.constant dense<0.000000e+00> : vector<16x32xf32>
    %159 = tpu.matmul %157, %158, %cst_56 {dimension_numbers = #tpu.dot_dimension_numbers<[1], [0], [0], [1], [0, 0, 1, 1], [], []>} : vector<16x64xbf16>, vector<64x32xbf16>, vector<16x32xf32> -> vector<16x32xf32>
    %160 = arith.addf %141, %159 : vector<16x32xf32>
    %161 = vector.shape_cast %160 : vector<16x32xf32> to vector<2x8x32xf32>
    %c0_57 = arith.constant 0 : index
    %c0_58 = arith.constant 0 : index
    %c0_59 = arith.constant 0 : index
    %162 = vector.load %arg14[%c0_57, %c0_58, %c0_59] : memref<2x8x32xf32, #tpu.memory_space<vmem>>, vector<2x8x32xf32>
    tpu.vector_store %arg14[%c0_57, %c0_58, %c0_59], %161 {strides = array<i32>} : memref<2x8x32xf32, #tpu.memory_space<vmem>>, vector<2x8x32xf32>,
    return
  }
  func.func @transform_0(%arg0: i32) -> (i32, i32, i32) {
    %c0_i32 = arith.constant 0 : i32
    %c0_i32_0 = arith.constant 0 : i32
    %c0_i32_1 = arith.constant 0 : i32
    return %arg0, %c0_i32, %c0_i32_0 : i32, i32, i32
  }
  func.func @transform_1(%arg0: i32) -> (i32, i32) {
    %c0_i32 = arith.constant 0 : i32
    %c0_i32_0 = arith.constant 0 : i32
    %c0_i32_1 = arith.constant 0 : i32
    return %c0_i32, %c0_i32_0 : i32, i32
  }
  func.func @transform_2(%arg0: i32) -> (i32, i32) {
    %c0_i32 = arith.constant 0 : i32
    %c0_i32_0 = arith.constant 0 : i32
    %c0_i32_1 = arith.constant 0 : i32
    return %c0_i32, %c0_i32_0 : i32, i32
  }
  func.func @transform_3(%arg0: i32) -> (i32, i32) {
    %c0_i32 = arith.constant 0 : i32
    %c0_i32_0 = arith.constant 0 : i32
    %c0_i32_1 = arith.constant 0 : i32
    return %c0_i32, %c0_i32_0 : i32, i32
  }
  func.func @transform_4(%arg0: i32) -> (i32, i32) {
    %c0_i32 = arith.constant 0 : i32
    %c0_i32_0 = arith.constant 0 : i32
    %c0_i32_1 = arith.constant 0 : i32
    return %c0_i32, %c0_i32_0 : i32, i32
  }
  func.func @transform_5(%arg0: i32) -> (i32, i32) {
    %c0_i32 = arith.constant 0 : i32
    %c0_i32_0 = arith.constant 0 : i32
    %c0_i32_1 = arith.constant 0 : i32
    return %c0_i32, %c0_i32_0 : i32, i32
  }
  func.func @transform_6(%arg0: i32) -> (i32, i32) {
    %c0_i32 = arith.constant 0 : i32
    %c0_i32_0 = arith.constant 0 : i32
    %c0_i32_1 = arith.constant 0 : i32
    return %c0_i32, %c0_i32_0 : i32, i32
  }
  func.func @transform_7(%arg0: i32) -> (i32, i32) {
    %c0_i32 = arith.constant 0 : i32
    %c0_i32_0 = arith.constant 0 : i32
    %c0_i32_1 = arith.constant 0 : i32
    return %c0_i32, %c0_i32_0 : i32, i32
  }
  func.func @transform_8(%arg0: i32) -> (i32, i32) {
    %c0_i32 = arith.constant 0 : i32
    %c0_i32_0 = arith.constant 0 : i32
    %c0_i32_1 = arith.constant 0 : i32
    return %c0_i32, %c0_i32_0 : i32, i32
  }
  func.func @transform_9(%arg0: i32) -> (i32, i32) {
    %c0_i32 = arith.constant 0 : i32
    %c0_i32_0 = arith.constant 0 : i32
    %c0_i32_1 = arith.constant 0 : i32
    return %c0_i32, %c0_i32_0 : i32, i32
  }
  func.func @transform_10(%arg0: i32) -> (i32, i32) {
    %c0_i32 = arith.constant 0 : i32
    %c0_i32_0 = arith.constant 0 : i32
    %c0_i32_1 = arith.constant 0 : i32
    return %c0_i32, %c0_i32_0 : i32, i32
  }
  func.func @transform_11(%arg0: i32) -> (i32, i32) {
    %c0_i32 = arith.constant 0 : i32
    %c0_i32_0 = arith.constant 0 : i32
    %c0_i32_1 = arith.constant 0 : i32
    return %c0_i32, %c0_i32_0 : i32, i32
  }
  func.func @transform_12(%arg0: i32) -> (i32, i32) {
    %c0_i32 = arith.constant 0 : i32
    %c0_i32_0 = arith.constant 0 : i32
    %c0_i32_1 = arith.constant 0 : i32
    return %c0_i32, %c0_i32_0 : i32, i32
  }
  func.func @transform_13(%arg0: i32) -> (i32, i32, i32) {
    %c0_i32 = arith.constant 0 : i32
    %c0_i32_0 = arith.constant 0 : i32
    %c0_i32_1 = arith.constant 0 : i32
    return %arg0, %c0_i32, %c0_i32_0 : i32, i32, i32
  }
}

</mosaic_0001>

<llo_original>
// kernel: tpu_custom_call.1
$region0: #{tpu_custom_call.1}
  #allocation0 [shape = 'u32[]', space=smem, size = 0x4, offset = 0x4, fixed_abs, tag = 'smem constant byte address 0x4 - core index']
  #allocation1 [shape = 'u32[144,128]{1,0:T(1,128)}', space=vmem, size = 0x12000, scoped, tag = 'internal scratch']
  #allocation2 [shape = 'f32[16,32]{1,0:T(8,128)}', space=vmem, size = 0x2000, scoped, tag = 'scratch operand']
  %s0 = inlined_call_operand.vmem [shape: f32[2,8,32], index: 0, kind: input, shape index: {}]
  %s1 = inlined_call_operand.vmem [shape: f32[1,32], index: 1, kind: input, shape index: {}]
  %s2 = inlined_call_operand.vmem [shape: f32[1,32], index: 2, kind: input, shape index: {}]
  %s3 = inlined_call_operand.vmem [shape: bf16[32,96], index: 3, kind: input, shape index: {}]
  %s4 = inlined_call_operand.hbm [shape: f32[1,96], index: 4, kind: input, shape index: {}]
  %s5 = inlined_call_operand.vmem [shape: bf16[32,32], index: 5, kind: input, shape index: {}]
  %s6 = inlined_call_operand.hbm [shape: f32[1,32], index: 6, kind: input, shape index: {}]
  %s7 = inlined_call_operand.hbm [shape: f32[1,32], index: 7, kind: input, shape index: {}]
  %s8 = inlined_call_operand.hbm [shape: f32[1,32], index: 8, kind: input, shape index: {}]
  %s9 = inlined_call_operand.vmem [shape: bf16[32,64], index: 9, kind: input, shape index: {}]
  %s10 = inlined_call_operand.vmem [shape: f32[1,64], index: 10, kind: input, shape index: {}]
  %s11 = inlined_call_operand.vmem [shape: bf16[64,32], index: 11, kind: input, shape index: {}]
  %s12 = inlined_call_operand.vmem [shape: f32[1,32], index: 12, kind: input, shape index: {}]
  %s13 = inlined_call_operand.hbm [shape: f32[2,8,32], index: 13, kind: output, shape index: {}]
  %s14 = sld [smem:[#allocation0]]
  $region78: #{tpu_custom_call.1} parent=0
    _
  %s16 = ssub.s32 1, %s14
  %s17 = scalar_select 0, %s16, %s14
  $region1: #{tpu_custom_call.1} parent=0
    #allocation3 [shape = 'u8[512]{0}', space=vmem, size = 0x400, scoped, tag = 'input window, operand 4, single buffered']
    #allocation4 [shape = 's32[1]{0}', space=sflag, size = 0x4, scoped, tag = 'scoped memory for tpu_custom_call.1']
    #allocation5 [shape = 's32[1]{0}', space=sflag, size = 0x4, scoped, tag = 'scoped memory for tpu_custom_call.1']
    #allocation6 [shape = 'u8[512]{0}', space=vmem, size = 0x400, scoped, tag = 'input window, operand 6, single buffered']
    #allocation7 [shape = 's32[1]{0}', space=sflag, size = 0x4, scoped, tag = 'scoped memory for tpu_custom_call.1']
    #allocation8 [shape = 'u8[512]{0}', space=vmem, size = 0x400, scoped, tag = 'input window, operand 7, single buffered']
    #allocation9 [shape = 'u8[512]{0}', space=vmem, size = 0x400, scoped, tag = 'input window, operand 8, single buffered']
    #allocation10 [shape = 's32[1]{0}', space=sflag, size = 0x4, scoped, tag = 'scoped memory for tpu_custom_call.1']
    #allocation11 [shape = 'u8[8192]{0}', space=vmem, size = 0x2000, scoped, tag = 'output window, operand 0, single buffered']
    %18 = vsyncpa [#allocation4], 0
    %19 = vsyncpa [#allocation7], 0
    %20 = vsyncpa [#allocation10], 0
    %21 = vsyncpa [#allocation5], 0
    // Predicated region
    $region2: #{tpu_custom_call.1} parent=1 // pred_check
      _
    $region3: #{tpu_custom_call.1} parent=1 // pred_check_branch
      %23 = sbr.rel (0) target = $region5
    $region4: #{tpu_custom_call.1} parent=1 // pred_region
      _
    $region5: #{tpu_custom_call.1} parent=1 // pred_fallthru
      _
    // Predicated region
    $region6: #{tpu_custom_call.1} parent=1 // pred_check
      _
    $region7: #{tpu_custom_call.1} parent=1 // pred_check_branch
      %25 = sbr.rel (0) target = $region9
    $region8: #{tpu_custom_call.1} parent=1 // pred_region
      _
    $region9: #{tpu_custom_call.1} parent=1 // pred_fallthru
      _
    // Predicated region
    $region10: #{tpu_custom_call.1} parent=1 // pred_check
      _
    $region11: #{tpu_custom_call.1} parent=1 // pred_check_branch
      %27 = sbr.rel (0) target = $region13
    $region12: #{tpu_custom_call.1} parent=1 // pred_region
      _
    $region13: #{tpu_custom_call.1} parent=1 // pred_fallthru
      _
    // Predicated region
    $region14: #{tpu_custom_call.1} parent=1 // pred_check
      _
    $region15: #{tpu_custom_call.1} parent=1 // pred_check_branch
      %29 = sbr.rel (0) target = $region17
    $region16: #{tpu_custom_call.1} parent=1 // pred_region
      _
    $region17: #{tpu_custom_call.1} parent=1 // pred_fallthru
      _
    // Predicated region
    $region18: #{tpu_custom_call.1} parent=1 // pred_check
      _
    $region19: #{tpu_custom_call.1} parent=1 // pred_check_branch
      %31 = sbr.rel (0) target = $region21
    $region20: #{tpu_custom_call.1} parent=1 // pred_region
      %s33 = ssub.s32 16, 16
      %34 = vsyncadd [#allocation4], %s33
      %s36 = sshll.u32 [#allocation3], 4
      %s37 = int_to_ptr.vmem [resolvable:$true] %s36
      %39 = dma.hbm_to_vmem [thread:$0]  %s4, 16, %s37, [#allocation4]
    $region21: #{tpu_custom_call.1} parent=1 // pred_fallthru
      _
    // Predicated region
    $region22: #{tpu_custom_call.1} parent=1 // pred_check
      _
    $region23: #{tpu_custom_call.1} parent=1 // pred_check_branch
      %41 = sbr.rel (0) target = $region25
    $region24: #{tpu_custom_call.1} parent=1 // pred_region
      _
    $region25: #{tpu_custom_call.1} parent=1 // pred_fallthru
      _
    // Predicated region
    $region26: #{tpu_custom_call.1} parent=1 // pred_check
      _
    $region27: #{tpu_custom_call.1} parent=1 // pred_check_branch
      %43 = sbr.rel (0) target = $region29
    $region28: #{tpu_custom_call.1} parent=1 // pred_region
      %s45 = ssub.s32 16, 16
      %46 = vsyncadd [#allocation7], %s45
      %s48 = sshll.u32 [#allocation6], 4
      %s49 = int_to_ptr.vmem [resolvable:$true] %s48
      %51 = dma.hbm_to_vmem [thread:$0]  %s6, 16, %s49, [#allocation7]
    $region29: #{tpu_custom_call.1} parent=1 // pred_fallthru
      _
    // Predicated region
    $region30: #{tpu_custom_call.1} parent=1 // pred_check
      _
    $region31: #{tpu_custom_call.1} parent=1 // pred_check_branch
      %53 = sbr.rel (0) target = $region33
    $region32: #{tpu_custom_call.1} parent=1 // pred_region
      %s55 = ssub.s32 16, 16
      %56 = vsyncadd [#allocation7], %s55
      %s58 = sshll.u32 [#allocation8], 4
      %s59 = int_to_ptr.vmem [resolvable:$true] %s58
      %61 = dma.hbm_to_vmem [thread:$0]  %s7, 16, %s59, [#allocation7]
    $region33: #{tpu_custom_call.1} parent=1 // pred_fallthru
      _
    // Predicated region
    $region34: #{tpu_custom_call.1} parent=1 // pred_check
      _
    $region35: #{tpu_custom_call.1} parent=1 // pred_check_branch
      %63 = sbr.rel (0) target = $region37
    $region36: #{tpu_custom_call.1} parent=1 // pred_region
      %s65 = ssub.s32 16, 16
      %66 = vsyncadd [#allocation10], %s65
      %s68 = sshll.u32 [#allocation9], 4
      %s69 = int_to_ptr.vmem [resolvable:$true] %s68
      %71 = dma.hbm_to_vmem [thread:$0]  %s8, 16, %s69, [#allocation10]
    $region37: #{tpu_custom_call.1} parent=1 // pred_fallthru
      _
    // Predicated region
    $region38: #{tpu_custom_call.1} parent=1 // pred_check
      _
    $region39: #{tpu_custom_call.1} parent=1 // pred_check_branch
      %73 = sbr.rel (0) target = $region41
    $region40: #{tpu_custom_call.1} parent=1 // pred_region
      _
    $region41: #{tpu_custom_call.1} parent=1 // pred_fallthru
      _
    // Predicated region
    $region42: #{tpu_custom_call.1} parent=1 // pred_check
      _
    $region43: #{tpu_custom_call.1} parent=1 // pred_check_branch
      %75 = sbr.rel (0) target = $region45
    $region44: #{tpu_custom_call.1} parent=1 // pred_region
      _
    $region45: #{tpu_custom_call.1} parent=1 // pred_fallthru
      _
    // Predicated region
    $region46: #{tpu_custom_call.1} parent=1 // pred_check
      _
    $region47: #{tpu_custom_call.1} parent=1 // pred_check_branch
      %77 = sbr.rel (0) target = $region49
    $region48: #{tpu_custom_call.1} parent=1 // pred_region
      _
    $region49: #{tpu_custom_call.1} parent=1 // pred_fallthru
      _
    // Predicated region
    $region50: #{tpu_custom_call.1} parent=1 // pred_check
      _
    $region51: #{tpu_custom_call.1} parent=1 // pred_check_branch
      %79 = sbr.rel (0) target = $region53
    $region52: #{tpu_custom_call.1} parent=1 // pred_region
      _
    $region53: #{tpu_custom_call.1} parent=1 // pred_fallthru
      _
    // Predicated region
    $region54: #{tpu_custom_call.1} parent=1 // pred_check
      _
    $region55: #{tpu_custom_call.1} parent=1 // pred_check_branch
      %81 = sbr.rel (0) target = $region57
    $region56: #{tpu_custom_call.1} parent=1 // pred_region
      %82 = dma.done [#allocation4], 16
    $region57: #{tpu_custom_call.1} parent=1 // pred_fallthru
      _
    // Predicated region
    $region58: #{tpu_custom_call.1} parent=1 // pred_check
      _
    $region59: #{tpu_custom_call.1} parent=1 // pred_check_branch
      %84 = sbr.rel (0) target = $region61
    $region60: #{tpu_custom_call.1} parent=1 // pred_region
      %85 = dma.done [#allocation7], 16
    $region61: #{tpu_custom_call.1} parent=1 // pred_fallthru
      _
    // Predicated region
    $region62: #{tpu_custom_call.1} parent=1 // pred_check
      _
    $region63: #{tpu_custom_call.1} parent=1 // pred_check_branch
      %87 = sbr.rel (0) target = $region65
    $region64: #{tpu_custom_call.1} parent=1 // pred_region
      %88 = dma.done [#allocation7], 16
    $region65: #{tpu_custom_call.1} parent=1 // pred_fallthru
      _
    // Predicated region
    $region66: #{tpu_custom_call.1} parent=1 // pred_check
      _
    $region67: #{tpu_custom_call.1} parent=1 // pred_check_branch
      %90 = sbr.rel (0) target = $region69
    $region68: #{tpu_custom_call.1} parent=1 // pred_region
      %91 = dma.done [#allocation10], 16
    $region69: #{tpu_custom_call.1} parent=1 // pred_fallthru
      _
    %v93 = vld [vmem:[%s0] sm:$0xff]
    %v94 = vld [vmem:[%s0 + $0x8] sm:$0xff]
    %v95 = vld [vmem:[%s1] sm:$0x1]
    %v96 = vld [vmem:[%s2] sm:$0x1]
    %vm97 = vcmask 261120
    %v98 = vsel %vm97, %v93, 0.0
    %99 = vadd.xlane.f32.xlu0 %v98
    %v100 = vpop.xlane.xlu0 %99
    %v101 = vsel %vm97, %v94, 0.0
    %102 = vadd.xlane.f32.xlu0 %v101
    %v103 = vpop.xlane.xlu0 %102
    %v104 = vrcp.pop 32.0
    %v105 = vmul.f32 %v100, %v104
    %v106 = vmul.f32 %v103, %v104
    %v107 = vsub.f32 %v93, %v105
    %v108 = vsub.f32 %v94, %v106
    %v109 = vmul.f32 %v107, %v107
    %v110 = vmul.f32 %v108, %v108
    %v111 = vsel %vm97, %v109, 0.0
    %112 = vadd.xlane.f32.xlu0 %v111
    %v113 = vpop.xlane.xlu0 %112
    %v114 = vsel %vm97, %v110, 0.0
    %115 = vadd.xlane.f32.xlu0 %v114
    %v116 = vpop.xlane.xlu0 %115
    %v117 = vmul.f32 %v113, %v104
    %v118 = vmul.f32 %v116, %v104
    %v119 = vadd.f32 %v117, 1e-05
    %v120 = vadd.f32 %v118, 1e-05
    %v121 = vrsqrt.pop %v119
    %v122 = vrsqrt.pop %v120
    %v123 = vmul.f32 %v107, %v121
    %v124 = vmul.f32 %v108, %v122
    %v126 = vlaneseq
    %v127 = vshrl.u32 %v126, 7
    %v128 = vsub.s32 0, %v127
    %v129 = vrot.slane %v95, %v128
    %v131 = vmul.f32 %v123, %v129
    %v132 = vmul.f32 %v124, %v129
    %v134 = vlaneseq
    %v135 = vshrl.u32 %v134, 7
    %v136 = vsub.s32 0, %v135
    %v137 = vrot.slane %v96, %v136
    %v139 = vadd.f32 %v131, %v137
    %v140 = vadd.f32 %v132, %v137
    %v141 = vpack.c.bf16 %v140, %v139
    %v142 = vld [vmem:[%s3] sm:$0xf]
    %v143 = vld [vmem:[%s3 + $0x4] sm:$0xf]
    %v144 = vld [vmem:[%s3 + $0x8] sm:$0xf]
    %v145 = vld [vmem:[%s3 + $0xc] sm:$0xf]
    %v146 = vld [vmem:[#allocation3] sm:$0x1]
    %v148 = vlaneseq
    %v149 = vshrl.u32 %v148, 7
    %v150 = vsub.s32 0, %v149
    %v151 = vrot.slane %v146, %v150
    %v157 = vunpack.c.l.b16 %v142
    %v158 = vunpack.c.l.b16 %v143
    %v159 = vunpack.c.l.b16 %v144
    %v160 = vunpack.c.l.b16 %v145
    %v161 = vpack.c.b16 %v158, %v157
    %v162 = vpack.c.b16 %v160, %v159
    %v166 = vsel %vm97, %v141, 0
    %168 = vmatprep.subr.bf16.mxu0 0
    %169 = vmatpush1.bf16.msra.mxu0 %v161
    %170 = vmatprep.subr.bf16.mxu0 0
    %171 = vmatpush1.bf16.msra.mxu0 %v162
    %172 = vmatprep.subr.bf16.mxu0 0
    %173 = vmatpush1.bf16.msra.mxu0 0
    %174 = vmatprep.subr.bf16.mxu0 0
    %175 = vmatpush1.bf16.msra.mxu0 0
    %176 = vmatprep.subr.bf16.mxu0 0
    %177 = vmatpush1.bf16.msra.mxu0 0
    %178 = vmatprep.subr.bf16.mxu0 0
    %179 = vmatpush1.bf16.msra.mxu0 0
    %180 = vmatprep.subr.bf16.mxu0 0
    %181 = vmatpush1.bf16.msra.mxu0 0
    %182 = vmatprep.subr.bf16.mxu0 0
    %183 = vmatpush1.bf16.msra.mxu0 0
    %184 = vmatprep.subr.bf16.mxu0 0
    %185 = vmatpush1.bf16.msra.mxu0 0
    %186 = vmatprep.subr.bf16.mxu0 0
    %187 = vmatpush1.bf16.msra.mxu0 0
    %188 = vmatprep.subr.bf16.mxu0 0
    %189 = vmatpush1.bf16.msra.mxu0 0
    %190 = vmatprep.subr.bf16.mxu0 0
    %191 = vmatpush1.bf16.msra.mxu0 0
    %192 = vmatprep.subr.bf16.mxu0 0
    %193 = vmatpush1.bf16.msra.mxu0 0
    %194 = vmatprep.subr.bf16.mxu0 0
    %195 = vmatpush1.bf16.msra.mxu0 0
    %196 = vmatprep.subr.bf16.mxu0 0
    %197 = vmatpush1.bf16.msra.mxu0 0
    %198 = vmatprep.subr.bf16.mxu0 0
    %199 = vmatpush1.bf16.msra.mxu0 0
    %200 = vmatprep.mubr.bf16.mxu0 0
    %201 = vmatmul.mubr.bf16.gmra.mrb[0].mxu0 %v166
    %v202 = vpop.f32.mrb[0].mxu0
    %v203 = vadd.f32 %v151, %v202
    %v204 = vpop.f32.mrb[0].mxu0
    %v205 = vpop.f32.mrb[0].mxu0
    %v206 = vadd.f32 %v151, %v205
    %v207 = vpop.f32.mrb[0].mxu0
    %208 = vdwg.mxu0
    %210 = vrot.lane.b32.xlu0 %v203, 120
    %v211 = vpop.permute.xlu0 %210
    %213 = vrot.lane.b32.xlu0 %v203, 112
    %v214 = vpop.permute.xlu0 %213
    %216 = vrot.lane.b32.xlu0 %v203, 104
    %v217 = vpop.permute.xlu0 %216
    %v219 = vcombine.low %v203, %v214
    %v220 = vcombine.high %v203, %v214
    %v222 = vunpack.c.l.s4 1983009808
    %v223 = vunpack.c.0.s8 %v222
    %v224 = vlaneseq
    %v225 = vshrl.u32 %v224, 7
    %v226 = vsub.s32 %v223, %v225
    %v227 = vrot.slane %v219, %v226
    %v229 = vunpack.c.l.s4 1983009808
    %v230 = vunpack.c.0.s8 %v229
    %v231 = vlaneseq
    %v232 = vshrl.u32 %v231, 7
    %v233 = vsub.s32 %v230, %v232
    %v234 = vrot.slane %v220, %v233
    %v235 = vcombine.low %v211, %v217
    %v236 = vcombine.high %v211, %v217
    %v238 = vunpack.c.l.s4 1983009808
    %v239 = vunpack.c.0.s8 %v238
    %v240 = vlaneseq
    %v241 = vshrl.u32 %v240, 7
    %v242 = vsub.s32 %v239, %v241
    %v243 = vrot.slane %v235, %v242
    %v245 = vunpack.c.l.s4 1983009808
    %v246 = vunpack.c.0.s8 %v245
    %v247 = vlaneseq
    %v248 = vshrl.u32 %v247, 7
    %v249 = vsub.s32 %v246, %v248
    %v250 = vrot.slane %v236, %v249
    %v251 = vcombine.low %v227, %v243
    %v252 = vcombine.high %v227, %v243
    %v254 = vunpack.c.l.s4 1934713408
    %v255 = vunpack.c.0.s8 %v254
    %v256 = vlaneseq
    %v257 = vshrl.u32 %v256, 7
    %v258 = vsub.s32 %v255, %v257
    %v259 = vrot.slane %v251, %v258
    %v261 = vunpack.c.l.s4 1934713408
    %v262 = vunpack.c.0.s8 %v261
    %v263 = vlaneseq
    %v264 = vshrl.u32 %v263, 7
    %v265 = vsub.s32 %v262, %v264
    %v266 = vrot.slane %v252, %v265
    %v267 = vcombine.low %v234, %v250
    %v268 = vcombine.high %v234, %v250
    %v270 = vunpack.c.l.s4 1934713408
    %v271 = vunpack.c.0.s8 %v270
    %v272 = vlaneseq
    %v273 = vshrl.u32 %v272, 7
    %v274 = vsub.s32 %v271, %v273
    %v275 = vrot.slane %v267, %v274
    %v277 = vunpack.c.l.s4 1934713408
    %v278 = vunpack.c.0.s8 %v277
    %v279 = vlaneseq
    %v280 = vshrl.u32 %v279, 7
    %v281 = vsub.s32 %v278, %v280
    %v282 = vrot.slane %v268, %v281
    %v283 = vcombine.high %v259, 0.0
    %v284 = vcombine.high %v266, 0.0
    %v285 = vcombine.high %v275, 0.0
    %v286 = vcombine.high %v282, 0.0
    %v287 = vcombine.low %v259, %v266
    %v289 = vunpack.c.l.s4 1983009808
    %v290 = vunpack.c.0.s8 %v289
    %v291 = vlaneseq
    %v292 = vshrl.u32 %v291, 7
    %v293 = vsub.s32 %v290, %v292
    %v294 = vrot.slane %v287, %v293
    %v295 = vcombine.low %v283, %v284
    %v297 = vunpack.c.l.s4 1983009808
    %v298 = vunpack.c.0.s8 %v297
    %v299 = vlaneseq
    %v300 = vshrl.u32 %v299, 7
    %v301 = vsub.s32 %v298, %v300
    %v302 = vrot.slane %v295, %v301
    %v303 = vcombine.low %v275, %v282
    %v305 = vunpack.c.l.s4 1983009808
    %v306 = vunpack.c.0.s8 %v305
    %v307 = vlaneseq
    %v308 = vshrl.u32 %v307, 7
    %v309 = vsub.s32 %v306, %v308
    %v310 = vrot.slane %v303, %v309
    %v311 = vcombine.low %v285, %v286
    %v313 = vunpack.c.l.s4 1983009808
    %v314 = vunpack.c.0.s8 %v313
    %v315 = vlaneseq
    %v316 = vshrl.u32 %v315, 7
    %v317 = vsub.s32 %v314, %v316
    %v318 = vrot.slane %v311, %v317
    %v319 = vcombine.low %v294, %v302
    %v320 = vcombine.high %v294, %v302
    %v322 = vunpack.c.l.s4 1934713408
    %v323 = vunpack.c.0.s8 %v322
    %v324 = vlaneseq
    %v325 = vshrl.u32 %v324, 7
    %v326 = vsub.s32 %v323, %v325
    %v327 = vrot.slane %v319, %v326
    %v329 = vunpack.c.l.s4 1934713408
    %v330 = vunpack.c.0.s8 %v329
    %v331 = vlaneseq
    %v332 = vshrl.u32 %v331, 7
    %v333 = vsub.s32 %v330, %v332
    %v334 = vrot.slane %v320, %v333
    %v335 = vcombine.low %v310, %v318
    %v336 = vcombine.high %v310, %v318
    %v338 = vunpack.c.l.s4 1934713408
    %v339 = vunpack.c.0.s8 %v338
    %v340 = vlaneseq
    %v341 = vshrl.u32 %v340, 7
    %v342 = vsub.s32 %v339, %v341
    %v343 = vrot.slane %v335, %v342
    %v345 = vunpack.c.l.s4 1934713408
    %v346 = vunpack.c.0.s8 %v345
    %v347 = vlaneseq
    %v348 = vshrl.u32 %v347, 7
    %v349 = vsub.s32 %v346, %v348
    %v350 = vrot.slane %v336, %v349
    %v351 = vcombine.low %v327, %v343
    %v352 = vcombine.high %v327, %v343
    %v353 = vcombine.low %v334, %v350
    %v354 = vcombine.high %v334, %v350
    %v355 = vpack.c.bf16 %v351, %v351
    %v356 = vpack.c.bf16 %v352, %v352
    %v357 = vpack.c.bf16 %v353, %v353
    %v358 = vpack.c.bf16 %v354, %v354
    %359 = vrot.lane.b32.xlu0 %v203, 96
    %v360 = vpop.permute.xlu0 %359
    %361 = vrot.lane.b32.xlu0 %v211, 96
    %v362 = vpop.permute.xlu0 %361
    %363 = vrot.lane.b32.xlu0 %v214, 96
    %v364 = vpop.permute.xlu0 %363
    %365 = vrot.lane.b32.xlu0 %v217, 96
    %v366 = vpop.permute.xlu0 %365
    %v371 = vcombine.low %v360, %v364
    %v372 = vcombine.high %v360, %v364
    %v374 = vunpack.c.l.s4 1983009808
    %v375 = vunpack.c.0.s8 %v374
    %v376 = vlaneseq
    %v377 = vshrl.u32 %v376, 7
    %v378 = vsub.s32 %v375, %v377
    %v379 = vrot.slane %v371, %v378
    %v381 = vunpack.c.l.s4 1983009808
    %v382 = vunpack.c.0.s8 %v381
    %v383 = vlaneseq
    %v384 = vshrl.u32 %v383, 7
    %v385 = vsub.s32 %v382, %v384
    %v386 = vrot.slane %v372, %v385
    %v387 = vcombine.low %v362, %v366
    %v388 = vcombine.high %v362, %v366
    %v390 = vunpack.c.l.s4 1983009808
    %v391 = vunpack.c.0.s8 %v390
    %v392 = vlaneseq
    %v393 = vshrl.u32 %v392, 7
    %v394 = vsub.s32 %v391, %v393
    %v395 = vrot.slane %v387, %v394
    %v397 = vunpack.c.l.s4 1983009808
    %v398 = vunpack.c.0.s8 %v397
    %v399 = vlaneseq
    %v400 = vshrl.u32 %v399, 7
    %v401 = vsub.s32 %v398, %v400
    %v402 = vrot.slane %v388, %v401
    %v403 = vcombine.low %v379, %v395
    %v404 = vcombine.high %v379, %v395
    %v406 = vunpack.c.l.s4 1934713408
    %v407 = vunpack.c.0.s8 %v406
    %v408 = vlaneseq
    %v409 = vshrl.u32 %v408, 7
    %v410 = vsub.s32 %v407, %v409
    %v411 = vrot.slane %v403, %v410
    %v413 = vunpack.c.l.s4 1934713408
    %v414 = vunpack.c.0.s8 %v413
    %v415 = vlaneseq
    %v416 = vshrl.u32 %v415, 7
    %v417 = vsub.s32 %v414, %v416
    %v418 = vrot.slane %v404, %v417
    %v419 = vcombine.low %v386, %v402
    %v420 = vcombine.high %v386, %v402
    %v422 = vunpack.c.l.s4 1934713408
    %v423 = vunpack.c.0.s8 %v422
    %v424 = vlaneseq
    %v425 = vshrl.u32 %v424, 7
    %v426 = vsub.s32 %v423, %v425
    %v427 = vrot.slane %v419, %v426
    %v429 = vunpack.c.l.s4 1934713408
    %v430 = vunpack.c.0.s8 %v429
    %v431 = vlaneseq
    %v432 = vshrl.u32 %v431, 7
    %v433 = vsub.s32 %v430, %v432
    %v434 = vrot.slane %v420, %v433
    %v435 = vcombine.high %v411, 0.0
    %v436 = vcombine.high %v418, 0.0
    %v437 = vcombine.high %v427, 0.0
    %v438 = vcombine.high %v434, 0.0
    %v439 = vcombine.low %v411, %v418
    %v441 = vunpack.c.l.s4 1983009808
    %v442 = vunpack.c.0.s8 %v441
    %v443 = vlaneseq
    %v444 = vshrl.u32 %v443, 7
    %v445 = vsub.s32 %v442, %v444
    %v446 = vrot.slane %v439, %v445
    %v447 = vcombine.low %v435, %v436
    %v449 = vunpack.c.l.s4 1983009808
    %v450 = vunpack.c.0.s8 %v449
    %v451 = vlaneseq
    %v452 = vshrl.u32 %v451, 7
    %v453 = vsub.s32 %v450, %v452
    %v454 = vrot.slane %v447, %v453
    %v455 = vcombine.low %v427, %v434
    %v457 = vunpack.c.l.s4 1983009808
    %v458 = vunpack.c.0.s8 %v457
    %v459 = vlaneseq
    %v460 = vshrl.u32 %v459, 7
    %v461 = vsub.s32 %v458, %v460
    %v462 = vrot.slane %v455, %v461
    %v463 = vcombine.low %v437, %v438
    %v465 = vunpack.c.l.s4 1983009808
    %v466 = vunpack.c.0.s8 %v465
    %v467 = vlaneseq
    %v468 = vshrl.u32 %v467, 7
    %v469 = vsub.s32 %v466, %v468
    %v470 = vrot.slane %v463, %v469
    %v471 = vcombine.low %v446, %v454
    %v472 = vcombine.high %v446, %v454
    %v474 = vunpack.c.l.s4 1934713408
    %v475 = vunpack.c.0.s8 %v474
    %v476 = vlaneseq
    %v477 = vshrl.u32 %v476, 7
    %v478 = vsub.s32 %v475, %v477
    %v479 = vrot.slane %v471, %v478
    %v481 = vunpack.c.l.s4 1934713408
    %v482 = vunpack.c.0.s8 %v481
    %v483 = vlaneseq
    %v484 = vshrl.u32 %v483, 7
    %v485 = vsub.s32 %v482, %v484
    %v486 = vrot.slane %v472, %v485
    %v487 = vcombine.low %v462, %v470
    %v488 = vcombine.high %v462, %v470
    %v490 = vunpack.c.l.s4 1934713408
    %v491 = vunpack.c.0.s8 %v490
    %v492 = vlaneseq
    %v493 = vshrl.u32 %v492, 7
    %v494 = vsub.s32 %v491, %v493
    %v495 = vrot.slane %v487, %v494
    %v497 = vunpack.c.l.s4 1934713408
    %v498 = vunpack.c.0.s8 %v497
    %v499 = vlaneseq
    %v500 = vshrl.u32 %v499, 7
    %v501 = vsub.s32 %v498, %v500
    %v502 = vrot.slane %v488, %v501
    %v503 = vcombine.low %v479, %v495
    %v504 = vcombine.high %v479, %v495
    %v505 = vcombine.low %v486, %v502
    %v506 = vcombine.high %v486, %v502
    %v507 = vpack.c.bf16 %v503, %v503
    %v508 = vpack.c.bf16 %v504, %v504
    %v509 = vpack.c.bf16 %v505, %v505
    %v510 = vpack.c.bf16 %v506, %v506
    %511 = vrot.lane.b32.xlu0 %v203, 64
    %v512 = vpop.permute.xlu0 %511
    %513 = vrot.lane.b32.xlu0 %v211, 64
    %v514 = vpop.permute.xlu0 %513
    %515 = vrot.lane.b32.xlu0 %v214, 64
    %v516 = vpop.permute.xlu0 %515
    %517 = vrot.lane.b32.xlu0 %v217, 64
    %v518 = vpop.permute.xlu0 %517
    %v523 = vcombine.low %v512, %v516
    %v524 = vcombine.high %v512, %v516
    %v526 = vunpack.c.l.s4 1983009808
    %v527 = vunpack.c.0.s8 %v526
    %v528 = vlaneseq
    %v529 = vshrl.u32 %v528, 7
    %v530 = vsub.s32 %v527, %v529
    %v531 = vrot.slane %v523, %v530
    %v533 = vunpack.c.l.s4 1983009808
    %v534 = vunpack.c.0.s8 %v533
    %v535 = vlaneseq
    %v536 = vshrl.u32 %v535, 7
    %v537 = vsub.s32 %v534, %v536
    %v538 = vrot.slane %v524, %v537
    %v539 = vcombine.low %v514, %v518
    %v540 = vcombine.high %v514, %v518
    %v542 = vunpack.c.l.s4 1983009808
    %v543 = vunpack.c.0.s8 %v542
    %v544 = vlaneseq
    %v545 = vshrl.u32 %v544, 7
    %v546 = vsub.s32 %v543, %v545
    %v547 = vrot.slane %v539, %v546
    %v549 = vunpack.c.l.s4 1983009808
    %v550 = vunpack.c.0.s8 %v549
    %v551 = vlaneseq
    %v552 = vshrl.u32 %v551, 7
    %v553 = vsub.s32 %v550, %v552
    %v554 = vrot.slane %v540, %v553
    %v555 = vcombine.low %v531, %v547
    %v556 = vcombine.high %v531, %v547
    %v558 = vunpack.c.l.s4 1934713408
    %v559 = vunpack.c.0.s8 %v558
    %v560 = vlaneseq
    %v561 = vshrl.u32 %v560, 7
    %v562 = vsub.s32 %v559, %v561
    %v563 = vrot.slane %v555, %v562
    %v565 = vunpack.c.l.s4 1934713408
    %v566 = vunpack.c.0.s8 %v565
    %v567 = vlaneseq
    %v568 = vshrl.u32 %v567, 7
    %v569 = vsub.s32 %v566, %v568
    %v570 = vrot.slane %v556, %v569
    %v571 = vcombine.low %v538, %v554
    %v572 = vcombine.high %v538, %v554
    %v574 = vunpack.c.l.s4 1934713408
    %v575 = vunpack.c.0.s8 %v574
    %v576 = vlaneseq
    %v577 = vshrl.u32 %v576, 7
    %v578 = vsub.s32 %v575, %v577
    %v579 = vrot.slane %v571, %v578
    %v581 = vunpack.c.l.s4 1934713408
    %v582 = vunpack.c.0.s8 %v581
    %v583 = vlaneseq
    %v584 = vshrl.u32 %v583, 7
    %v585 = vsub.s32 %v582, %v584
    %v586 = vrot.slane %v572, %v585
    %v587 = vcombine.high %v563, 0.0
    %v588 = vcombine.high %v570, 0.0
    %v589 = vcombine.high %v579, 0.0
    %v590 = vcombine.high %v586, 0.0
    %v591 = vcombine.low %v563, %v570
    %v593 = vunpack.c.l.s4 1983009808
    %v594 = vunpack.c.0.s8 %v593
    %v595 = vlaneseq
    %v596 = vshrl.u32 %v595, 7
    %v597 = vsub.s32 %v594, %v596
    %v598 = vrot.slane %v591, %v597
    %v599 = vcombine.low %v587, %v588
    %v601 = vunpack.c.l.s4 1983009808
    %v602 = vunpack.c.0.s8 %v601
    %v603 = vlaneseq
    %v604 = vshrl.u32 %v603, 7
    %v605 = vsub.s32 %v602, %v604
    %v606 = vrot.slane %v599, %v605
    %v607 = vcombine.low %v579, %v586
    %v609 = vunpack.c.l.s4 1983009808
    %v610 = vunpack.c.0.s8 %v609
    %v611 = vlaneseq
    %v612 = vshrl.u32 %v611, 7
    %v613 = vsub.s32 %v610, %v612
    %v614 = vrot.slane %v607, %v613
    %v615 = vcombine.low %v589, %v590
    %v617 = vunpack.c.l.s4 1983009808
    %v618 = vunpack.c.0.s8 %v617
    %v619 = vlaneseq
    %v620 = vshrl.u32 %v619, 7
    %v621 = vsub.s32 %v618, %v620
    %v622 = vrot.slane %v615, %v621
    %v623 = vcombine.low %v598, %v606
    %v624 = vcombine.high %v598, %v606
    %v626 = vunpack.c.l.s4 1934713408
    %v627 = vunpack.c.0.s8 %v626
    %v628 = vlaneseq
    %v629 = vshrl.u32 %v628, 7
    %v630 = vsub.s32 %v627, %v629
    %v631 = vrot.slane %v623, %v630
    %v633 = vunpack.c.l.s4 1934713408
    %v634 = vunpack.c.0.s8 %v633
    %v635 = vlaneseq
    %v636 = vshrl.u32 %v635, 7
    %v637 = vsub.s32 %v634, %v636
    %v638 = vrot.slane %v624, %v637
    %v639 = vcombine.low %v614, %v622
    %v640 = vcombine.high %v614, %v622
    %v642 = vunpack.c.l.s4 1934713408
    %v643 = vunpack.c.0.s8 %v642
    %v644 = vlaneseq
    %v645 = vshrl.u32 %v644, 7
    %v646 = vsub.s32 %v643, %v645
    %v647 = vrot.slane %v639, %v646
    %v649 = vunpack.c.l.s4 1934713408
    %v650 = vunpack.c.0.s8 %v649
    %v651 = vlaneseq
    %v652 = vshrl.u32 %v651, 7
    %v653 = vsub.s32 %v650, %v652
    %v654 = vrot.slane %v640, %v653
    %v655 = vcombine.low %v631, %v647
    %v656 = vcombine.high %v631, %v647
    %v657 = vcombine.low %v638, %v654
    %v658 = vcombine.high %v638, %v654
    %v659 = vpack.c.bf16 %v655, %v655
    %v660 = vpack.c.bf16 %v656, %v656
    %v661 = vpack.c.bf16 %v657, %v657
    %v662 = vpack.c.bf16 %v658, %v658
    %vm663 = vcmask 64512
    %v665 = vsel %vm663, %v355, 0
    %v668 = vsel %vm663, %v507, 0
    %670 = vmatprep.subr.bf16.mxu0 0
    %671 = vmatpush1.bf16.xpose.msra.mxu0 %v668
    %672 = vmatprep.subr.bf16.mxu0 0
    %673 = vmatpush1.bf16.xpose.msra.mxu0 0
    %674 = vmatprep.subr.bf16.mxu0 0
    %675 = vmatpush1.bf16.xpose.msra.mxu0 0
    %676 = vmatprep.subr.bf16.mxu0 0
    %677 = vmatpush1.bf16.xpose.msra.mxu0 0
    %678 = vmatprep.subr.bf16.mxu0 0
    %679 = vmatpush1.bf16.xpose.msra.mxu0 0
    %680 = vmatprep.subr.bf16.mxu0 0
    %681 = vmatpush1.bf16.xpose.msra.mxu0 0
    %682 = vmatprep.subr.bf16.mxu0 0
    %683 = vmatpush1.bf16.xpose.msra.mxu0 0
    %684 = vmatprep.subr.bf16.mxu0 0
    %685 = vmatpush1.bf16.xpose.msra.mxu0 0
    %686 = vmatprep.subr.bf16.mxu0 0
    %687 = vmatpush1.bf16.xpose.msra.mxu0 0
    %688 = vmatprep.subr.bf16.mxu0 0
    %689 = vmatpush1.bf16.xpose.msra.mxu0 0
    %690 = vmatprep.subr.bf16.mxu0 0
    %691 = vmatpush1.bf16.xpose.msra.mxu0 0
    %692 = vmatprep.subr.bf16.mxu0 0
    %693 = vmatpush1.bf16.xpose.msra.mxu0 0
    %694 = vmatprep.subr.bf16.mxu0 0
    %695 = vmatpush1.bf16.xpose.msra.mxu0 0
    %696 = vmatprep.subr.bf16.mxu0 0
    %697 = vmatpush1.bf16.xpose.msra.mxu0 0
    %698 = vmatprep.subr.bf16.mxu0 0
    %699 = vmatpush1.bf16.xpose.msra.mxu0 0
    %700 = vmatprep.subr.bf16.mxu0 0
    %701 = vmatpush1.bf16.xpose.msra.mxu0 0
    %702 = vmatprep.mubr.bf16.mxu0 0
    %703 = vmatmul.mubr.bf16.gmra.mrb[0].mxu0 %v665
    %v704 = vpop.f32.mrb[0].mxu0
    %v705 = vadd.f32 0.0, %v704
    %v706 = vpop.f32.mrb[0].mxu0
    %v707 = vpop.f32.mrb[0].mxu0
    %v708 = vpop.f32.mrb[0].mxu0
    %709 = vdwg.mxu0
    %v711 = vsel %vm663, %v356, 0
    %v714 = vsel %vm663, %v508, 0
    %716 = vmatprep.subr.bf16.mxu0 0
    %717 = vmatpush1.bf16.xpose.msra.mxu0 %v714
    %718 = vmatprep.subr.bf16.mxu0 0
    %719 = vmatpush1.bf16.xpose.msra.mxu0 0
    %720 = vmatprep.subr.bf16.mxu0 0
    %721 = vmatpush1.bf16.xpose.msra.mxu0 0
    %722 = vmatprep.subr.bf16.mxu0 0
    %723 = vmatpush1.bf16.xpose.msra.mxu0 0
    %724 = vmatprep.subr.bf16.mxu0 0
    %725 = vmatpush1.bf16.xpose.msra.mxu0 0
    %726 = vmatprep.subr.bf16.mxu0 0
    %727 = vmatpush1.bf16.xpose.msra.mxu0 0
    %728 = vmatprep.subr.bf16.mxu0 0
    %729 = vmatpush1.bf16.xpose.msra.mxu0 0
    %730 = vmatprep.subr.bf16.mxu0 0
    %731 = vmatpush1.bf16.xpose.msra.mxu0 0
    %732 = vmatprep.subr.bf16.mxu0 0
    %733 = vmatpush1.bf16.xpose.msra.mxu0 0
    %734 = vmatprep.subr.bf16.mxu0 0
    %735 = vmatpush1.bf16.xpose.msra.mxu0 0
    %736 = vmatprep.subr.bf16.mxu0 0
    %737 = vmatpush1.bf16.xpose.msra.mxu0 0
    %738 = vmatprep.subr.bf16.mxu0 0
    %739 = vmatpush1.bf16.xpose.msra.mxu0 0
    %740 = vmatprep.subr.bf16.mxu0 0
    %741 = vmatpush1.bf16.xpose.msra.mxu0 0
    %742 = vmatprep.subr.bf16.mxu0 0
    %743 = vmatpush1.bf16.xpose.msra.mxu0 0
    %744 = vmatprep.subr.bf16.mxu0 0
    %745 = vmatpush1.bf16.xpose.msra.mxu0 0
    %746 = vmatprep.subr.bf16.mxu0 0
    %747 = vmatpush1.bf16.xpose.msra.mxu0 0
    %748 = vmatprep.mubr.bf16.mxu0 0
    %749 = vmatmul.mubr.bf16.gmra.mrb[0].mxu0 %v711
    %v750 = vpop.f32.mrb[0].mxu0
    %v751 = vadd.f32 0.0, %v750
    %v752 = vpop.f32.mrb[0].mxu0
    %v753 = vpop.f32.mrb[0].mxu0
    %v754 = vpop.f32.mrb[0].mxu0
    %755 = vdwg.mxu0
    %v757 = vsel %vm663, %v357, 0
    %v760 = vsel %vm663, %v509, 0
    %762 = vmatprep.subr.bf16.mxu0 0
    %763 = vmatpush1.bf16.xpose.msra.mxu0 %v760
    %764 = vmatprep.subr.bf16.mxu0 0
    %765 = vmatpush1.bf16.xpose.msra.mxu0 0
    %766 = vmatprep.subr.bf16.mxu0 0
    %767 = vmatpush1.bf16.xpose.msra.mxu0 0
    %768 = vmatprep.subr.bf16.mxu0 0
    %769 = vmatpush1.bf16.xpose.msra.mxu0 0
    %770 = vmatprep.subr.bf16.mxu0 0
    %771 = vmatpush1.bf16.xpose.msra.mxu0 0
    %772 = vmatprep.subr.bf16.mxu0 0
    %773 = vmatpush1.bf16.xpose.msra.mxu0 0
    %774 = vmatprep.subr.bf16.mxu0 0
    %775 = vmatpush1.bf16.xpose.msra.mxu0 0
    %776 = vmatprep.subr.bf16.mxu0 0
    %777 = vmatpush1.bf16.xpose.msra.mxu0 0
    %778 = vmatprep.subr.bf16.mxu0 0
    %779 = vmatpush1.bf16.xpose.msra.mxu0 0
    %780 = vmatprep.subr.bf16.mxu0 0
    %781 = vmatpush1.bf16.xpose.msra.mxu0 0
    %782 = vmatprep.subr.bf16.mxu0 0
    %783 = vmatpush1.bf16.xpose.msra.mxu0 0
    %784 = vmatprep.subr.bf16.mxu0 0
    %785 = vmatpush1.bf16.xpose.msra.mxu0 0
    %786 = vmatprep.subr.bf16.mxu0 0
    %787 = vmatpush1.bf16.xpose.msra.mxu0 0
    %788 = vmatprep.subr.bf16.mxu0 0
    %789 = vmatpush1.bf16.xpose.msra.mxu0 0
    %790 = vmatprep.subr.bf16.mxu0 0
    %791 = vmatpush1.bf16.xpose.msra.mxu0 0
    %792 = vmatprep.subr.bf16.mxu0 0
    %793 = vmatpush1.bf16.xpose.msra.mxu0 0
    %794 = vmatprep.mubr.bf16.mxu0 0
    %795 = vmatmul.mubr.bf16.gmra.mrb[0].mxu0 %v757
    %v796 = vpop.f32.mrb[0].mxu0
    %v797 = vadd.f32 0.0, %v796
    %v798 = vpop.f32.mrb[0].mxu0
    %v799 = vpop.f32.mrb[0].mxu0
    %v800 = vpop.f32.mrb[0].mxu0
    %801 = vdwg.mxu0
    %v803 = vsel %vm663, %v358, 0
    %v806 = vsel %vm663, %v510, 0
    %808 = vmatprep.subr.bf16.mxu0 0
    %809 = vmatpush1.bf16.xpose.msra.mxu0 %v806
    %810 = vmatprep.subr.bf16.mxu0 0
    %811 = vmatpush1.bf16.xpose.msra.mxu0 0
    %812 = vmatprep.subr.bf16.mxu0 0
    %813 = vmatpush1.bf16.xpose.msra.mxu0 0
    %814 = vmatprep.subr.bf16.mxu0 0
    %815 = vmatpush1.bf16.xpose.msra.mxu0 0
    %816 = vmatprep.subr.bf16.mxu0 0
    %817 = vmatpush1.bf16.xpose.msra.mxu0 0
    %818 = vmatprep.subr.bf16.mxu0 0
    %819 = vmatpush1.bf16.xpose.msra.mxu0 0
    %820 = vmatprep.subr.bf16.mxu0 0
    %821 = vmatpush1.bf16.xpose.msra.mxu0 0
    %822 = vmatprep.subr.bf16.mxu0 0
    %823 = vmatpush1.bf16.xpose.msra.mxu0 0
    %824 = vmatprep.subr.bf16.mxu0 0
    %825 = vmatpush1.bf16.xpose.msra.mxu0 0
    %826 = vmatprep.subr.bf16.mxu0 0
    %827 = vmatpush1.bf16.xpose.msra.mxu0 0
    %828 = vmatprep.subr.bf16.mxu0 0
    %829 = vmatpush1.bf16.xpose.msra.mxu0 0
    %830 = vmatprep.subr.bf16.mxu0 0
    %831 = vmatpush1.bf16.xpose.msra.mxu0 0
    %832 = vmatprep.subr.bf16.mxu0 0
    %833 = vmatpush1.bf16.xpose.msra.mxu0 0
    %834 = vmatprep.subr.bf16.mxu0 0
    %835 = vmatpush1.bf16.xpose.msra.mxu0 0
    %836 = vmatprep.subr.bf16.mxu0 0
    %837 = vmatpush1.bf16.xpose.msra.mxu0 0
    %838 = vmatprep.subr.bf16.mxu0 0
    %839 = vmatpush1.bf16.xpose.msra.mxu0 0
    %840 = vmatprep.mubr.bf16.mxu0 0
    %841 = vmatmul.mubr.bf16.gmra.mrb[0].mxu0 %v803
    %v842 = vpop.f32.mrb[0].mxu0
    %v843 = vadd.f32 0.0, %v842
    %v844 = vpop.f32.mrb[0].mxu0
    %v845 = vpop.f32.mrb[0].mxu0
    %v846 = vpop.f32.mrb[0].mxu0
    %847 = vdwg.mxu0
    %v848 = vmul.f32 %v705, 0.35355338
    %v849 = vmul.f32 %v751, 0.35355338
    %v850 = vmul.f32 %v797, 0.35355338
    %v851 = vmul.f32 %v843, 0.35355338
    %v852 = vsel %vm663, %v848, -inf
    %853 = vmax.xlane.f32.xlu0 %v852
    %v854 = vpop.xlane.xlu0 %853
    %v855 = vsel %vm663, %v849, -inf
    %856 = vmax.xlane.f32.xlu0 %v855
    %v857 = vpop.xlane.xlu0 %856
    %v858 = vsel %vm663, %v850, -inf
    %859 = vmax.xlane.f32.xlu0 %v858
    %v860 = vpop.xlane.xlu0 %859
    %v861 = vsel %vm663, %v851, -inf
    %862 = vmax.xlane.f32.xlu0 %v861
    %v863 = vpop.xlane.xlu0 %862
    %v864 = vsub.f32 %v848, %v854
    %v865 = vsub.f32 %v849, %v857
    %v866 = vsub.f32 %v850, %v860
    %v867 = vsub.f32 %v851, %v863
    %v868 = vmul.f32 %v864, 1.442695
    %v869 = vpow.pop %v868
    %v870 = vmul.f32 %v865, 1.442695
    %v871 = vpow.pop %v870
    %v872 = vmul.f32 %v866, 1.442695
    %v873 = vpow.pop %v872
    %v874 = vmul.f32 %v867, 1.442695
    %v875 = vpow.pop %v874
    %v876 = vsel %vm663, %v869, 0.0
    %877 = vadd.xlane.f32.xlu0 %v876
    %v878 = vpop.xlane.xlu0 %877
    %v879 = vsel %vm663, %v871, 0.0
    %880 = vadd.xlane.f32.xlu0 %v879
    %v881 = vpop.xlane.xlu0 %880
    %v882 = vsel %vm663, %v873, 0.0
    %883 = vadd.xlane.f32.xlu0 %v882
    %v884 = vpop.xlane.xlu0 %883
    %v885 = vsel %vm663, %v875, 0.0
    %886 = vadd.xlane.f32.xlu0 %v885
    %v887 = vpop.xlane.xlu0 %886
    %v888 = vrcp.pop %v878
    %v889 = vrcp.pop %v881
    %v890 = vrcp.pop %v884
    %v891 = vrcp.pop %v887
    %v892 = vpack.c.bf16 %v869, %v869
    %v893 = vpack.c.bf16 %v871, %v871
    %v894 = vpack.c.bf16 %v873, %v873
    %v895 = vpack.c.bf16 %v875, %v875
    %v897 = vsel %vm663, %v892, 0
    %vm899 = vcmask 1043456
    %v901 = vsel %vm899, %v659, 0
    %903 = vmatprep.subr.bf16.mxu0 0
    %904 = vmatpush1.bf16.msra.mxu0 %v901
    %905 = vmatprep.subr.bf16.mxu0 0
    %906 = vmatpush1.bf16.msra.mxu0 0
    %907 = vmatprep.subr.bf16.mxu0 0
    %908 = vmatpush1.bf16.msra.mxu0 0
    %909 = vmatprep.subr.bf16.mxu0 0
    %910 = vmatpush1.bf16.msra.mxu0 0
    %911 = vmatprep.subr.bf16.mxu0 0
    %912 = vmatpush1.bf16.msra.mxu0 0
    %913 = vmatprep.subr.bf16.mxu0 0
    %914 = vmatpush1.bf16.msra.mxu0 0
    %915 = vmatprep.subr.bf16.mxu0 0
    %916 = vmatpush1.bf16.msra.mxu0 0
    %917 = vmatprep.subr.bf16.mxu0 0
    %918 = vmatpush1.bf16.msra.mxu0 0
    %919 = vmatprep.subr.bf16.mxu0 0
    %920 = vmatpush1.bf16.msra.mxu0 0
    %921 = vmatprep.subr.bf16.mxu0 0
    %922 = vmatpush1.bf16.msra.mxu0 0
    %923 = vmatprep.subr.bf16.mxu0 0
    %924 = vmatpush1.bf16.msra.mxu0 0
    %925 = vmatprep.subr.bf16.mxu0 0
    %926 = vmatpush1.bf16.msra.mxu0 0
    %927 = vmatprep.subr.bf16.mxu0 0
    %928 = vmatpush1.bf16.msra.mxu0 0
    %929 = vmatprep.subr.bf16.mxu0 0
    %930 = vmatpush1.bf16.msra.mxu0 0
    %931 = vmatprep.subr.bf16.mxu0 0
    %932 = vmatpush1.bf16.msra.mxu0 0
    %933 = vmatprep.subr.bf16.mxu0 0
    %934 = vmatpush1.bf16.msra.mxu0 0
    %935 = vmatprep.mubr.bf16.mxu0 0
    %936 = vmatmul.mubr.bf16.gmra.mrb[0].mxu0 %v897
    %v937 = vpop.f32.mrb[0].mxu0
    %v938 = vadd.f32 0.0, %v937
    %v939 = vpop.f32.mrb[0].mxu0
    %v940 = vpop.f32.mrb[0].mxu0
    %v941 = vpop.f32.mrb[0].mxu0
    %942 = vdwg.mxu0
    %v944 = vsel %vm663, %v893, 0
    %v947 = vsel %vm899, %v660, 0
    %949 = vmatprep.subr.bf16.mxu0 0
    %950 = vmatpush1.bf16.msra.mxu0 %v947
    %951 = vmatprep.subr.bf16.mxu0 0
    %952 = vmatpush1.bf16.msra.mxu0 0
    %953 = vmatprep.subr.bf16.mxu0 0
    %954 = vmatpush1.bf16.msra.mxu0 0
    %955 = vmatprep.subr.bf16.mxu0 0
    %956 = vmatpush1.bf16.msra.mxu0 0
    %957 = vmatprep.subr.bf16.mxu0 0
    %958 = vmatpush1.bf16.msra.mxu0 0
    %959 = vmatprep.subr.bf16.mxu0 0
    %960 = vmatpush1.bf16.msra.mxu0 0
    %961 = vmatprep.subr.bf16.mxu0 0
    %962 = vmatpush1.bf16.msra.mxu0 0
    %963 = vmatprep.subr.bf16.mxu0 0
    %964 = vmatpush1.bf16.msra.mxu0 0
    %965 = vmatprep.subr.bf16.mxu0 0
    %966 = vmatpush1.bf16.msra.mxu0 0
    %967 = vmatprep.subr.bf16.mxu0 0
    %968 = vmatpush1.bf16.msra.mxu0 0
    %969 = vmatprep.subr.bf16.mxu0 0
    %970 = vmatpush1.bf16.msra.mxu0 0
    %971 = vmatprep.subr.bf16.mxu0 0
    %972 = vmatpush1.bf16.msra.mxu0 0
    %973 = vmatprep.subr.bf16.mxu0 0
    %974 = vmatpush1.bf16.msra.mxu0 0
    %975 = vmatprep.subr.bf16.mxu0 0
    %976 = vmatpush1.bf16.msra.mxu0 0
    %977 = vmatprep.subr.bf16.mxu0 0
    %978 = vmatpush1.bf16.msra.mxu0 0
    %979 = vmatprep.subr.bf16.mxu0 0
    %980 = vmatpush1.bf16.msra.mxu0 0
    %981 = vmatprep.mubr.bf16.mxu0 0
    %982 = vmatmul.mubr.bf16.gmra.mrb[0].mxu0 %v944
    %v983 = vpop.f32.mrb[0].mxu0
    %v984 = vadd.f32 0.0, %v983
    %v985 = vpop.f32.mrb[0].mxu0
    %v986 = vpop.f32.mrb[0].mxu0
    %v987 = vpop.f32.mrb[0].mxu0
    %988 = vdwg.mxu0
    %v990 = vsel %vm663, %v894, 0
    %v993 = vsel %vm899, %v661, 0
    %995 = vmatprep.subr.bf16.mxu0 0
    %996 = vmatpush1.bf16.msra.mxu0 %v993
    %997 = vmatprep.subr.bf16.mxu0 0
    %998 = vmatpush1.bf16.msra.mxu0 0
    %999 = vmatprep.subr.bf16.mxu0 0
    %1000 = vmatpush1.bf16.msra.mxu0 0
    %1001 = vmatprep.subr.bf16.mxu0 0
    %1002 = vmatpush1.bf16.msra.mxu0 0
    %1003 = vmatprep.subr.bf16.mxu0 0
    %1004 = vmatpush1.bf16.msra.mxu0 0
    %1005 = vmatprep.subr.bf16.mxu0 0
    %1006 = vmatpush1.bf16.msra.mxu0 0
    %1007 = vmatprep.subr.bf16.mxu0 0
    %1008 = vmatpush1.bf16.msra.mxu0 0
    %1009 = vmatprep.subr.bf16.mxu0 0
    %1010 = vmatpush1.bf16.msra.mxu0 0
    %1011 = vmatprep.subr.bf16.mxu0 0
    %1012 = vmatpush1.bf16.msra.mxu0 0
    %1013 = vmatprep.subr.bf16.mxu0 0
    %1014 = vmatpush1.bf16.msra.mxu0 0
    %1015 = vmatprep.subr.bf16.mxu0 0
    %1016 = vmatpush1.bf16.msra.mxu0 0
    %1017 = vmatprep.subr.bf16.mxu0 0
    %1018 = vmatpush1.bf16.msra.mxu0 0
    %1019 = vmatprep.subr.bf16.mxu0 0
    %1020 = vmatpush1.bf16.msra.mxu0 0
    %1021 = vmatprep.subr.bf16.mxu0 0
    %1022 = vmatpush1.bf16.msra.mxu0 0
    %1023 = vmatprep.subr.bf16.mxu0 0
    %1024 = vmatpush1.bf16.msra.mxu0 0
    %1025 = vmatprep.subr.bf16.mxu0 0
    %1026 = vmatpush1.bf16.msra.mxu0 0
    %1027 = vmatprep.mubr.bf16.mxu0 0
    %1028 = vmatmul.mubr.bf16.gmra.mrb[0].mxu0 %v990
    %v1029 = vpop.f32.mrb[0].mxu0
    %v1030 = vadd.f32 0.0, %v1029
    %v1031 = vpop.f32.mrb[0].mxu0
    %v1032 = vpop.f32.mrb[0].mxu0
    %v1033 = vpop.f32.mrb[0].mxu0
    %1034 = vdwg.mxu0
    %v1036 = vsel %vm663, %v895, 0
    %v1039 = vsel %vm899, %v662, 0
    %1041 = vmatprep.subr.bf16.mxu0 0
    %1042 = vmatpush1.bf16.msra.mxu0 %v1039
    %1043 = vmatprep.subr.bf16.mxu0 0
    %1044 = vmatpush1.bf16.msra.mxu0 0
    %1045 = vmatprep.subr.bf16.mxu0 0
    %1046 = vmatpush1.bf16.msra.mxu0 0
    %1047 = vmatprep.subr.bf16.mxu0 0
    %1048 = vmatpush1.bf16.msra.mxu0 0
    %1049 = vmatprep.subr.bf16.mxu0 0
    %1050 = vmatpush1.bf16.msra.mxu0 0
    %1051 = vmatprep.subr.bf16.mxu0 0
    %1052 = vmatpush1.bf16.msra.mxu0 0
    %1053 = vmatprep.subr.bf16.mxu0 0
    %1054 = vmatpush1.bf16.msra.mxu0 0
    %1055 = vmatprep.subr.bf16.mxu0 0
    %1056 = vmatpush1.bf16.msra.mxu0 0
    %1057 = vmatprep.subr.bf16.mxu0 0
    %1058 = vmatpush1.bf16.msra.mxu0 0
    %1059 = vmatprep.subr.bf16.mxu0 0
    %1060 = vmatpush1.bf16.msra.mxu0 0
    %1061 = vmatprep.subr.bf16.mxu0 0
    %1062 = vmatpush1.bf16.msra.mxu0 0
    %1063 = vmatprep.subr.bf16.mxu0 0
    %1064 = vmatpush1.bf16.msra.mxu0 0
    %1065 = vmatprep.subr.bf16.mxu0 0
    %1066 = vmatpush1.bf16.msra.mxu0 0
    %1067 = vmatprep.subr.bf16.mxu0 0
    %1068 = vmatpush1.bf16.msra.mxu0 0
    %1069 = vmatprep.subr.bf16.mxu0 0
    %1070 = vmatpush1.bf16.msra.mxu0 0
    %1071 = vmatprep.subr.bf16.mxu0 0
    %1072 = vmatpush1.bf16.msra.mxu0 0
    %1073 = vmatprep.mubr.bf16.mxu0 0
    %1074 = vmatmul.mubr.bf16.gmra.mrb[0].mxu0 %v1036
    %v1075 = vpop.f32.mrb[0].mxu0
    %v1076 = vadd.f32 0.0, %v1075
    %v1077 = vpop.f32.mrb[0].mxu0
    %v1078 = vpop.f32.mrb[0].mxu0
    %v1079 = vpop.f32.mrb[0].mxu0
    %1080 = vdwg.mxu0
    %v1081 = vmul.f32 %v938, %v888
    %v1082 = vmul.f32 %v984, %v889
    %v1083 = vmul.f32 %v1030, %v890
    %v1084 = vmul.f32 %v1076, %v891
    %v1085 = vcombine.low %v1081, %v1083
    %v1086 = vcombine.high %v1081, %v1083
    %v1088 = vunpack.c.l.s4 1983009808
    %v1089 = vunpack.c.0.s8 %v1088
    %v1090 = vlaneseq
    %v1091 = vshrl.u32 %v1090, 7
    %v1092 = vsub.s32 %v1089, %v1091
    %v1093 = vrot.slane %v1085, %v1092
    %v1095 = vunpack.c.l.s4 1983009808
    %v1096 = vunpack.c.0.s8 %v1095
    %v1097 = vlaneseq
    %v1098 = vshrl.u32 %v1097, 7
    %v1099 = vsub.s32 %v1096, %v1098
    %v1100 = vrot.slane %v1086, %v1099
    %v1101 = vcombine.low %v1082, %v1084
    %v1102 = vcombine.high %v1082, %v1084
    %v1104 = vunpack.c.l.s4 1983009808
    %v1105 = vunpack.c.0.s8 %v1104
    %v1106 = vlaneseq
    %v1107 = vshrl.u32 %v1106, 7
    %v1108 = vsub.s32 %v1105, %v1107
    %v1109 = vrot.slane %v1101, %v1108
    %v1111 = vunpack.c.l.s4 1983009808
    %v1112 = vunpack.c.0.s8 %v1111
    %v1113 = vlaneseq
    %v1114 = vshrl.u32 %v1113, 7
    %v1115 = vsub.s32 %v1112, %v1114
    %v1116 = vrot.slane %v1102, %v1115
    %v1117 = vcombine.low %v1093, %v1109
    %v1118 = vcombine.high %v1093, %v1109
    %v1120 = vunpack.c.l.s4 1934713408
    %v1121 = vunpack.c.0.s8 %v1120
    %v1122 = vlaneseq
    %v1123 = vshrl.u32 %v1122, 7
    %v1124 = vsub.s32 %v1121, %v1123
    %v1125 = vrot.slane %v1117, %v1124
    %v1127 = vunpack.c.l.s4 1934713408
    %v1128 = vunpack.c.0.s8 %v1127
    %v1129 = vlaneseq
    %v1130 = vshrl.u32 %v1129, 7
    %v1131 = vsub.s32 %v1128, %v1130
    %v1132 = vrot.slane %v1118, %v1131
    %v1133 = vcombine.low %v1100, %v1116
    %v1134 = vcombine.high %v1100, %v1116
    %v1136 = vunpack.c.l.s4 1934713408
    %v1137 = vunpack.c.0.s8 %v1136
    %v1138 = vlaneseq
    %v1139 = vshrl.u32 %v1138, 7
    %v1140 = vsub.s32 %v1137, %v1139
    %v1141 = vrot.slane %v1133, %v1140
    %v1143 = vunpack.c.l.s4 1934713408
    %v1144 = vunpack.c.0.s8 %v1143
    %v1145 = vlaneseq
    %v1146 = vshrl.u32 %v1145, 7
    %v1147 = vsub.s32 %v1144, %v1146
    %v1148 = vrot.slane %v1134, %v1147
    %v1149 = vcombine.high %v1125, 0.0
    %v1150 = vcombine.high %v1132, 0.0
    %v1151 = vcombine.high %v1141, 0.0
    %v1152 = vcombine.high %v1148, 0.0
    %v1153 = vcombine.low %v1125, %v1132
    %v1155 = vunpack.c.l.s4 1983009808
    %v1156 = vunpack.c.0.s8 %v1155
    %v1157 = vlaneseq
    %v1158 = vshrl.u32 %v1157, 7
    %v1159 = vsub.s32 %v1156, %v1158
    %v1160 = vrot.slane %v1153, %v1159
    %v1161 = vcombine.low %v1149, %v1150
    %v1163 = vunpack.c.l.s4 1983009808
    %v1164 = vunpack.c.0.s8 %v1163
    %v1165 = vlaneseq
    %v1166 = vshrl.u32 %v1165, 7
    %v1167 = vsub.s32 %v1164, %v1166
    %v1168 = vrot.slane %v1161, %v1167
    %v1169 = vcombine.low %v1141, %v1148
    %v1171 = vunpack.c.l.s4 1983009808
    %v1172 = vunpack.c.0.s8 %v1171
    %v1173 = vlaneseq
    %v1174 = vshrl.u32 %v1173, 7
    %v1175 = vsub.s32 %v1172, %v1174
    %v1176 = vrot.slane %v1169, %v1175
    %v1177 = vcombine.low %v1151, %v1152
    %v1179 = vunpack.c.l.s4 1983009808
    %v1180 = vunpack.c.0.s8 %v1179
    %v1181 = vlaneseq
    %v1182 = vshrl.u32 %v1181, 7
    %v1183 = vsub.s32 %v1180, %v1182
    %v1184 = vrot.slane %v1177, %v1183
    %v1185 = vcombine.low %v1160, %v1168
    %v1186 = vcombine.high %v1160, %v1168
    %v1188 = vunpack.c.l.s4 1934713408
    %v1189 = vunpack.c.0.s8 %v1188
    %v1190 = vlaneseq
    %v1191 = vshrl.u32 %v1190, 7
    %v1192 = vsub.s32 %v1189, %v1191
    %v1193 = vrot.slane %v1185, %v1192
    %v1195 = vunpack.c.l.s4 1934713408
    %v1196 = vunpack.c.0.s8 %v1195
    %v1197 = vlaneseq
    %v1198 = vshrl.u32 %v1197, 7
    %v1199 = vsub.s32 %v1196, %v1198
    %v1200 = vrot.slane %v1186, %v1199
    %v1201 = vcombine.low %v1176, %v1184
    %v1202 = vcombine.high %v1176, %v1184
    %v1204 = vunpack.c.l.s4 1934713408
    %v1205 = vunpack.c.0.s8 %v1204
    %v1206 = vlaneseq
    %v1207 = vshrl.u32 %v1206, 7
    %v1208 = vsub.s32 %v1205, %v1207
    %v1209 = vrot.slane %v1201, %v1208
    %v1211 = vunpack.c.l.s4 1934713408
    %v1212 = vunpack.c.0.s8 %v1211
    %v1213 = vlaneseq
    %v1214 = vshrl.u32 %v1213, 7
    %v1215 = vsub.s32 %v1212, %v1214
    %v1216 = vrot.slane %v1202, %v1215
    %v1217 = vcombine.low %v1193, %v1209
    %v1218 = vcombine.high %v1193, %v1209
    %v1219 = vcombine.low %v1200, %v1216
    %v1220 = vcombine.high %v1200, %v1216
    %1222 = vrot.lane.b32.xlu0 %v1218, 8
    %v1223 = vpop.permute.xlu0 %1222
    %1226 = vrot.lane.b32.xlu0 %v1219, 16
    %v1227 = vpop.permute.xlu0 %1226
    %1230 = vrot.lane.b32.xlu0 %v1220, 24
    %v1231 = vpop.permute.xlu0 %1230
    %v1233 = vsel %vm663, %v1217, %v1223
    %vm1234 = vcmask 130048
    %v1235 = vsel %vm1234, %v1233, %v1227
    %vm1236 = vcmask 195584
    %v1237 = vsel %vm1236, %v1235, %v1231
    %1238 = vst.msk [vmem:[#allocation2] sm:$0xff] %vm97, %v1237
    %1240 = vrot.lane.b32.xlu0 %v206, 120
    %v1241 = vpop.permute.xlu0 %1240
    %1243 = vrot.lane.b32.xlu0 %v206, 112
    %v1244 = vpop.permute.xlu0 %1243
    %1246 = vrot.lane.b32.xlu0 %v206, 104
    %v1247 = vpop.permute.xlu0 %1246
    %v1249 = vcombine.low %v206, %v1244
    %v1250 = vcombine.high %v206, %v1244
    %v1252 = vunpack.c.l.s4 1983009808
    %v1253 = vunpack.c.0.s8 %v1252
    %v1254 = vlaneseq
    %v1255 = vshrl.u32 %v1254, 7
    %v1256 = vsub.s32 %v1253, %v1255
    %v1257 = vrot.slane %v1249, %v1256
    %v1259 = vunpack.c.l.s4 1983009808
    %v1260 = vunpack.c.0.s8 %v1259
    %v1261 = vlaneseq
    %v1262 = vshrl.u32 %v1261, 7
    %v1263 = vsub.s32 %v1260, %v1262
    %v1264 = vrot.slane %v1250, %v1263
    %v1265 = vcombine.low %v1241, %v1247
    %v1266 = vcombine.high %v1241, %v1247
    %v1268 = vunpack.c.l.s4 1983009808
    %v1269 = vunpack.c.0.s8 %v1268
    %v1270 = vlaneseq
    %v1271 = vshrl.u32 %v1270, 7
    %v1272 = vsub.s32 %v1269, %v1271
    %v1273 = vrot.slane %v1265, %v1272
    %v1275 = vunpack.c.l.s4 1983009808
    %v1276 = vunpack.c.0.s8 %v1275
    %v1277 = vlaneseq
    %v1278 = vshrl.u32 %v1277, 7
    %v1279 = vsub.s32 %v1276, %v1278
    %v1280 = vrot.slane %v1266, %v1279
    %v1281 = vcombine.low %v1257, %v1273
    %v1282 = vcombine.high %v1257, %v1273
    %v1284 = vunpack.c.l.s4 1934713408
    %v1285 = vunpack.c.0.s8 %v1284
    %v1286 = vlaneseq
    %v1287 = vshrl.u32 %v1286, 7
    %v1288 = vsub.s32 %v1285, %v1287
    %v1289 = vrot.slane %v1281, %v1288
    %v1291 = vunpack.c.l.s4 1934713408
    %v1292 = vunpack.c.0.s8 %v1291
    %v1293 = vlaneseq
    %v1294 = vshrl.u32 %v1293, 7
    %v1295 = vsub.s32 %v1292, %v1294
    %v1296 = vrot.slane %v1282, %v1295
    %v1297 = vcombine.low %v1264, %v1280
    %v1298 = vcombine.high %v1264, %v1280
    %v1300 = vunpack.c.l.s4 1934713408
    %v1301 = vunpack.c.0.s8 %v1300
    %v1302 = vlaneseq
    %v1303 = vshrl.u32 %v1302, 7
    %v1304 = vsub.s32 %v1301, %v1303
    %v1305 = vrot.slane %v1297, %v1304
    %v1307 = vunpack.c.l.s4 1934713408
    %v1308 = vunpack.c.0.s8 %v1307
    %v1309 = vlaneseq
    %v1310 = vshrl.u32 %v1309, 7
    %v1311 = vsub.s32 %v1308, %v1310
    %v1312 = vrot.slane %v1298, %v1311
    %v1313 = vcombine.high %v1289, 0.0
    %v1314 = vcombine.high %v1296, 0.0
    %v1315 = vcombine.high %v1305, 0.0
    %v1316 = vcombine.high %v1312, 0.0
    %v1317 = vcombine.low %v1289, %v1296
    %v1319 = vunpack.c.l.s4 1983009808
    %v1320 = vunpack.c.0.s8 %v1319
    %v1321 = vlaneseq
    %v1322 = vshrl.u32 %v1321, 7
    %v1323 = vsub.s32 %v1320, %v1322
    %v1324 = vrot.slane %v1317, %v1323
    %v1325 = vcombine.low %v1313, %v1314
    %v1327 = vunpack.c.l.s4 1983009808
    %v1328 = vunpack.c.0.s8 %v1327
    %v1329 = vlaneseq
    %v1330 = vshrl.u32 %v1329, 7
    %v1331 = vsub.s32 %v1328, %v1330
    %v1332 = vrot.slane %v1325, %v1331
    %v1333 = vcombine.low %v1305, %v1312
    %v1335 = vunpack.c.l.s4 1983009808
    %v1336 = vunpack.c.0.s8 %v1335
    %v1337 = vlaneseq
    %v1338 = vshrl.u32 %v1337, 7
    %v1339 = vsub.s32 %v1336, %v1338
    %v1340 = vrot.slane %v1333, %v1339
    %v1341 = vcombine.low %v1315, %v1316
    %v1343 = vunpack.c.l.s4 1983009808
    %v1344 = vunpack.c.0.s8 %v1343
    %v1345 = vlaneseq
    %v1346 = vshrl.u32 %v1345, 7
    %v1347 = vsub.s32 %v1344, %v1346
    %v1348 = vrot.slane %v1341, %v1347
    %v1349 = vcombine.low %v1324, %v1332
    %v1350 = vcombine.high %v1324, %v1332
    %v1352 = vunpack.c.l.s4 1934713408
    %v1353 = vunpack.c.0.s8 %v1352
    %v1354 = vlaneseq
    %v1355 = vshrl.u32 %v1354, 7
    %v1356 = vsub.s32 %v1353, %v1355
    %v1357 = vrot.slane %v1349, %v1356
    %v1359 = vunpack.c.l.s4 1934713408
    %v1360 = vunpack.c.0.s8 %v1359
    %v1361 = vlaneseq
    %v1362 = vshrl.u32 %v1361, 7
    %v1363 = vsub.s32 %v1360, %v1362
    %v1364 = vrot.slane %v1350, %v1363
    %v1365 = vcombine.low %v1340, %v1348
    %v1366 = vcombine.high %v1340, %v1348
    %v1368 = vunpack.c.l.s4 1934713408
    %v1369 = vunpack.c.0.s8 %v1368
    %v1370 = vlaneseq
    %v1371 = vshrl.u32 %v1370, 7
    %v1372 = vsub.s32 %v1369, %v1371
    %v1373 = vrot.slane %v1365, %v1372
    %v1375 = vunpack.c.l.s4 1934713408
    %v1376 = vunpack.c.0.s8 %v1375
    %v1377 = vlaneseq
    %v1378 = vshrl.u32 %v1377, 7
    %v1379 = vsub.s32 %v1376, %v1378
    %v1380 = vrot.slane %v1366, %v1379
    %v1381 = vcombine.low %v1357, %v1373
    %v1382 = vcombine.high %v1357, %v1373
    %v1383 = vcombine.low %v1364, %v1380
    %v1384 = vcombine.high %v1364, %v1380
    %v1385 = vpack.c.bf16 %v1381, %v1381
    %v1386 = vpack.c.bf16 %v1382, %v1382
    %v1387 = vpack.c.bf16 %v1383, %v1383
    %v1388 = vpack.c.bf16 %v1384, %v1384
    %1389 = vrot.lane.b32.xlu0 %v206, 96
    %v1390 = vpop.permute.xlu0 %1389
    %1391 = vrot.lane.b32.xlu0 %v1241, 96
    %v1392 = vpop.permute.xlu0 %1391
    %1393 = vrot.lane.b32.xlu0 %v1244, 96
    %v1394 = vpop.permute.xlu0 %1393
    %1395 = vrot.lane.b32.xlu0 %v1247, 96
    %v1396 = vpop.permute.xlu0 %1395
    %v1401 = vcombine.low %v1390, %v1394
    %v1402 = vcombine.high %v1390, %v1394
    %v1404 = vunpack.c.l.s4 1983009808
    %v1405 = vunpack.c.0.s8 %v1404
    %v1406 = vlaneseq
    %v1407 = vshrl.u32 %v1406, 7
    %v1408 = vsub.s32 %v1405, %v1407
    %v1409 = vrot.slane %v1401, %v1408
    %v1411 = vunpack.c.l.s4 1983009808
    %v1412 = vunpack.c.0.s8 %v1411
    %v1413 = vlaneseq
    %v1414 = vshrl.u32 %v1413, 7
    %v1415 = vsub.s32 %v1412, %v1414
    %v1416 = vrot.slane %v1402, %v1415
    %v1417 = vcombine.low %v1392, %v1396
    %v1418 = vcombine.high %v1392, %v1396
    %v1420 = vunpack.c.l.s4 1983009808
    %v1421 = vunpack.c.0.s8 %v1420
    %v1422 = vlaneseq
    %v1423 = vshrl.u32 %v1422, 7
    %v1424 = vsub.s32 %v1421, %v1423
    %v1425 = vrot.slane %v1417, %v1424
    %v1427 = vunpack.c.l.s4 1983009808
    %v1428 = vunpack.c.0.s8 %v1427
    %v1429 = vlaneseq
    %v1430 = vshrl.u32 %v1429, 7
    %v1431 = vsub.s32 %v1428, %v1430
    %v1432 = vrot.slane %v1418, %v1431
    %v1433 = vcombine.low %v1409, %v1425
    %v1434 = vcombine.high %v1409, %v1425
    %v1436 = vunpack.c.l.s4 1934713408
    %v1437 = vunpack.c.0.s8 %v1436
    %v1438 = vlaneseq
    %v1439 = vshrl.u32 %v1438, 7
    %v1440 = vsub.s32 %v1437, %v1439
    %v1441 = vrot.slane %v1433, %v1440
    %v1443 = vunpack.c.l.s4 1934713408
    %v1444 = vunpack.c.0.s8 %v1443
    %v1445 = vlaneseq
    %v1446 = vshrl.u32 %v1445, 7
    %v1447 = vsub.s32 %v1444, %v1446
    %v1448 = vrot.slane %v1434, %v1447
    %v1449 = vcombine.low %v1416, %v1432
    %v1450 = vcombine.high %v1416, %v1432
    %v1452 = vunpack.c.l.s4 1934713408
    %v1453 = vunpack.c.0.s8 %v1452
    %v1454 = vlaneseq
    %v1455 = vshrl.u32 %v1454, 7
    %v1456 = vsub.s32 %v1453, %v1455
    %v1457 = vrot.slane %v1449, %v1456
    %v1459 = vunpack.c.l.s4 1934713408
    %v1460 = vunpack.c.0.s8 %v1459
    %v1461 = vlaneseq
    %v1462 = vshrl.u32 %v1461, 7
    %v1463 = vsub.s32 %v1460, %v1462
    %v1464 = vrot.slane %v1450, %v1463
    %v1465 = vcombine.high %v1441, 0.0
    %v1466 = vcombine.high %v1448, 0.0
    %v1467 = vcombine.high %v1457, 0.0
    %v1468 = vcombine.high %v1464, 0.0
    %v1469 = vcombine.low %v1441, %v1448
    %v1471 = vunpack.c.l.s4 1983009808
    %v1472 = vunpack.c.0.s8 %v1471
    %v1473 = vlaneseq
    %v1474 = vshrl.u32 %v1473, 7
    %v1475 = vsub.s32 %v1472, %v1474
    %v1476 = vrot.slane %v1469, %v1475
    %v1477 = vcombine.low %v1465, %v1466
    %v1479 = vunpack.c.l.s4 1983009808
    %v1480 = vunpack.c.0.s8 %v1479
    %v1481 = vlaneseq
    %v1482 = vshrl.u32 %v1481, 7
    %v1483 = vsub.s32 %v1480, %v1482
    %v1484 = vrot.slane %v1477, %v1483
    %v1485 = vcombine.low %v1457, %v1464
    %v1487 = vunpack.c.l.s4 1983009808
    %v1488 = vunpack.c.0.s8 %v1487
    %v1489 = vlaneseq
    %v1490 = vshrl.u32 %v1489, 7
    %v1491 = vsub.s32 %v1488, %v1490
    %v1492 = vrot.slane %v1485, %v1491
    %v1493 = vcombine.low %v1467, %v1468
    %v1495 = vunpack.c.l.s4 1983009808
    %v1496 = vunpack.c.0.s8 %v1495
    %v1497 = vlaneseq
    %v1498 = vshrl.u32 %v1497, 7
    %v1499 = vsub.s32 %v1496, %v1498
    %v1500 = vrot.slane %v1493, %v1499
    %v1501 = vcombine.low %v1476, %v1484
    %v1502 = vcombine.high %v1476, %v1484
    %v1504 = vunpack.c.l.s4 1934713408
    %v1505 = vunpack.c.0.s8 %v1504
    %v1506 = vlaneseq
    %v1507 = vshrl.u32 %v1506, 7
    %v1508 = vsub.s32 %v1505, %v1507
    %v1509 = vrot.slane %v1501, %v1508
    %v1511 = vunpack.c.l.s4 1934713408
    %v1512 = vunpack.c.0.s8 %v1511
    %v1513 = vlaneseq
    %v1514 = vshrl.u32 %v1513, 7
    %v1515 = vsub.s32 %v1512, %v1514
    %v1516 = vrot.slane %v1502, %v1515
    %v1517 = vcombine.low %v1492, %v1500
    %v1518 = vcombine.high %v1492, %v1500
    %v1520 = vunpack.c.l.s4 1934713408
    %v1521 = vunpack.c.0.s8 %v1520
    %v1522 = vlaneseq
    %v1523 = vshrl.u32 %v1522, 7
    %v1524 = vsub.s32 %v1521, %v1523
    %v1525 = vrot.slane %v1517, %v1524
    %v1527 = vunpack.c.l.s4 1934713408
    %v1528 = vunpack.c.0.s8 %v1527
    %v1529 = vlaneseq
    %v1530 = vshrl.u32 %v1529, 7
    %v1531 = vsub.s32 %v1528, %v1530
    %v1532 = vrot.slane %v1518, %v1531
    %v1533 = vcombine.low %v1509, %v1525
    %v1534 = vcombine.high %v1509, %v1525
    %v1535 = vcombine.low %v1516, %v1532
    %v1536 = vcombine.high %v1516, %v1532
    %v1537 = vpack.c.bf16 %v1533, %v1533
    %v1538 = vpack.c.bf16 %v1534, %v1534
    %v1539 = vpack.c.bf16 %v1535, %v1535
    %v1540 = vpack.c.bf16 %v1536, %v1536
    %1541 = vrot.lane.b32.xlu0 %v206, 64
    %v1542 = vpop.permute.xlu0 %1541
    %1543 = vrot.lane.b32.xlu0 %v1241, 64
    %v1544 = vpop.permute.xlu0 %1543
    %1545 = vrot.lane.b32.xlu0 %v1244, 64
    %v1546 = vpop.permute.xlu0 %1545
    %1547 = vrot.lane.b32.xlu0 %v1247, 64
    %v1548 = vpop.permute.xlu0 %1547
    %v1553 = vcombine.low %v1542, %v1546
    %v1554 = vcombine.high %v1542, %v1546
    %v1556 = vunpack.c.l.s4 1983009808
    %v1557 = vunpack.c.0.s8 %v1556
    %v1558 = vlaneseq
    %v1559 = vshrl.u32 %v1558, 7
    %v1560 = vsub.s32 %v1557, %v1559
    %v1561 = vrot.slane %v1553, %v1560
    %v1563 = vunpack.c.l.s4 1983009808
    %v1564 = vunpack.c.0.s8 %v1563
    %v1565 = vlaneseq
    %v1566 = vshrl.u32 %v1565, 7
    %v1567 = vsub.s32 %v1564, %v1566
    %v1568 = vrot.slane %v1554, %v1567
    %v1569 = vcombine.low %v1544, %v1548
    %v1570 = vcombine.high %v1544, %v1548
    %v1572 = vunpack.c.l.s4 1983009808
    %v1573 = vunpack.c.0.s8 %v1572
    %v1574 = vlaneseq
    %v1575 = vshrl.u32 %v1574, 7
    %v1576 = vsub.s32 %v1573, %v1575
    %v1577 = vrot.slane %v1569, %v1576
    %v1579 = vunpack.c.l.s4 1983009808
    %v1580 = vunpack.c.0.s8 %v1579
    %v1581 = vlaneseq
    %v1582 = vshrl.u32 %v1581, 7
    %v1583 = vsub.s32 %v1580, %v1582
    %v1584 = vrot.slane %v1570, %v1583
    %v1585 = vcombine.low %v1561, %v1577
    %v1586 = vcombine.high %v1561, %v1577
    %v1588 = vunpack.c.l.s4 1934713408
    %v1589 = vunpack.c.0.s8 %v1588
    %v1590 = vlaneseq
    %v1591 = vshrl.u32 %v1590, 7
    %v1592 = vsub.s32 %v1589, %v1591
    %v1593 = vrot.slane %v1585, %v1592
    %v1595 = vunpack.c.l.s4 1934713408
    %v1596 = vunpack.c.0.s8 %v1595
    %v1597 = vlaneseq
    %v1598 = vshrl.u32 %v1597, 7
    %v1599 = vsub.s32 %v1596, %v1598
    %v1600 = vrot.slane %v1586, %v1599
    %v1601 = vcombine.low %v1568, %v1584
    %v1602 = vcombine.high %v1568, %v1584
    %v1604 = vunpack.c.l.s4 1934713408
    %v1605 = vunpack.c.0.s8 %v1604
    %v1606 = vlaneseq
    %v1607 = vshrl.u32 %v1606, 7
    %v1608 = vsub.s32 %v1605, %v1607
    %v1609 = vrot.slane %v1601, %v1608
    %v1611 = vunpack.c.l.s4 1934713408
    %v1612 = vunpack.c.0.s8 %v1611
    %v1613 = vlaneseq
    %v1614 = vshrl.u32 %v1613, 7
    %v1615 = vsub.s32 %v1612, %v1614
    %v1616 = vrot.slane %v1602, %v1615
    %v1617 = vcombine.high %v1593, 0.0
    %v1618 = vcombine.high %v1600, 0.0
    %v1619 = vcombine.high %v1609, 0.0
    %v1620 = vcombine.high %v1616, 0.0
    %v1621 = vcombine.low %v1593, %v1600
    %v1623 = vunpack.c.l.s4 1983009808
    %v1624 = vunpack.c.0.s8 %v1623
    %v1625 = vlaneseq
    %v1626 = vshrl.u32 %v1625, 7
    %v1627 = vsub.s32 %v1624, %v1626
    %v1628 = vrot.slane %v1621, %v1627
    %v1629 = vcombine.low %v1617, %v1618
    %v1631 = vunpack.c.l.s4 1983009808
    %v1632 = vunpack.c.0.s8 %v1631
    %v1633 = vlaneseq
    %v1634 = vshrl.u32 %v1633, 7
    %v1635 = vsub.s32 %v1632, %v1634
    %v1636 = vrot.slane %v1629, %v1635
    %v1637 = vcombine.low %v1609, %v1616
    %v1639 = vunpack.c.l.s4 1983009808
    %v1640 = vunpack.c.0.s8 %v1639
    %v1641 = vlaneseq
    %v1642 = vshrl.u32 %v1641, 7
    %v1643 = vsub.s32 %v1640, %v1642
    %v1644 = vrot.slane %v1637, %v1643
    %v1645 = vcombine.low %v1619, %v1620
    %v1647 = vunpack.c.l.s4 1983009808
    %v1648 = vunpack.c.0.s8 %v1647
    %v1649 = vlaneseq
    %v1650 = vshrl.u32 %v1649, 7
    %v1651 = vsub.s32 %v1648, %v1650
    %v1652 = vrot.slane %v1645, %v1651
    %v1653 = vcombine.low %v1628, %v1636
    %v1654 = vcombine.high %v1628, %v1636
    %v1656 = vunpack.c.l.s4 1934713408
    %v1657 = vunpack.c.0.s8 %v1656
    %v1658 = vlaneseq
    %v1659 = vshrl.u32 %v1658, 7
    %v1660 = vsub.s32 %v1657, %v1659
    %v1661 = vrot.slane %v1653, %v1660
    %v1663 = vunpack.c.l.s4 1934713408
    %v1664 = vunpack.c.0.s8 %v1663
    %v1665 = vlaneseq
    %v1666 = vshrl.u32 %v1665, 7
    %v1667 = vsub.s32 %v1664, %v1666
    %v1668 = vrot.slane %v1654, %v1667
    %v1669 = vcombine.low %v1644, %v1652
    %v1670 = vcombine.high %v1644, %v1652
    %v1672 = vunpack.c.l.s4 1934713408
    %v1673 = vunpack.c.0.s8 %v1672
    %v1674 = vlaneseq
    %v1675 = vshrl.u32 %v1674, 7
    %v1676 = vsub.s32 %v1673, %v1675
    %v1677 = vrot.slane %v1669, %v1676
    %v1679 = vunpack.c.l.s4 1934713408
    %v1680 = vunpack.c.0.s8 %v1679
    %v1681 = vlaneseq
    %v1682 = vshrl.u32 %v1681, 7
    %v1683 = vsub.s32 %v1680, %v1682
    %v1684 = vrot.slane %v1670, %v1683
    %v1685 = vcombine.low %v1661, %v1677
    %v1686 = vcombine.high %v1661, %v1677
    %v1687 = vcombine.low %v1668, %v1684
    %v1688 = vcombine.high %v1668, %v1684
    %v1689 = vpack.c.bf16 %v1685, %v1685
    %v1690 = vpack.c.bf16 %v1686, %v1686
    %v1691 = vpack.c.bf16 %v1687, %v1687
    %v1692 = vpack.c.bf16 %v1688, %v1688
    %v1694 = vsel %vm663, %v1385, 0
    %v1697 = vsel %vm663, %v1537, 0
    %1699 = vmatprep.subr.bf16.mxu0 0
    %1700 = vmatpush1.bf16.xpose.msra.mxu0 %v1697
    %1701 = vmatprep.subr.bf16.mxu0 0
    %1702 = vmatpush1.bf16.xpose.msra.mxu0 0
    %1703 = vmatprep.subr.bf16.mxu0 0
    %1704 = vmatpush1.bf16.xpose.msra.mxu0 0
    %1705 = vmatprep.subr.bf16.mxu0 0
    %1706 = vmatpush1.bf16.xpose.msra.mxu0 0
    %1707 = vmatprep.subr.bf16.mxu0 0
    %1708 = vmatpush1.bf16.xpose.msra.mxu0 0
    %1709 = vmatprep.subr.bf16.mxu0 0
    %1710 = vmatpush1.bf16.xpose.msra.mxu0 0
    %1711 = vmatprep.subr.bf16.mxu0 0
    %1712 = vmatpush1.bf16.xpose.msra.mxu0 0
    %1713 = vmatprep.subr.bf16.mxu0 0
    %1714 = vmatpush1.bf16.xpose.msra.mxu0 0
    %1715 = vmatprep.subr.bf16.mxu0 0
    %1716 = vmatpush1.bf16.xpose.msra.mxu0 0
    %1717 = vmatprep.subr.bf16.mxu0 0
    %1718 = vmatpush1.bf16.xpose.msra.mxu0 0
    %1719 = vmatprep.subr.bf16.mxu0 0
    %1720 = vmatpush1.bf16.xpose.msra.mxu0 0
    %1721 = vmatprep.subr.bf16.mxu0 0
    %1722 = vmatpush1.bf16.xpose.msra.mxu0 0
    %1723 = vmatprep.subr.bf16.mxu0 0
    %1724 = vmatpush1.bf16.xpose.msra.mxu0 0
    %1725 = vmatprep.subr.bf16.mxu0 0
    %1726 = vmatpush1.bf16.xpose.msra.mxu0 0
    %1727 = vmatprep.subr.bf16.mxu0 0
    %1728 = vmatpush1.bf16.xpose.msra.mxu0 0
    %1729 = vmatprep.subr.bf16.mxu0 0
    %1730 = vmatpush1.bf16.xpose.msra.mxu0 0
    %1731 = vmatprep.mubr.bf16.mxu0 0
    %1732 = vmatmul.mubr.bf16.gmra.mrb[0].mxu0 %v1694
    %v1733 = vpop.f32.mrb[0].mxu0
    %v1734 = vadd.f32 0.0, %v1733
    %v1735 = vpop.f32.mrb[0].mxu0
    %v1736 = vpop.f32.mrb[0].mxu0
    %v1737 = vpop.f32.mrb[0].mxu0
    %1738 = vdwg.mxu0
    %v1740 = vsel %vm663, %v1386, 0
    %v1743 = vsel %vm663, %v1538, 0
    %1745 = vmatprep.subr.bf16.mxu0 0
    %1746 = vmatpush1.bf16.xpose.msra.mxu0 %v1743
    %1747 = vmatprep.subr.bf16.mxu0 0
    %1748 = vmatpush1.bf16.xpose.msra.mxu0 0
    %1749 = vmatprep.subr.bf16.mxu0 0
    %1750 = vmatpush1.bf16.xpose.msra.mxu0 0
    %1751 = vmatprep.subr.bf16.mxu0 0
    %1752 = vmatpush1.bf16.xpose.msra.mxu0 0
    %1753 = vmatprep.subr.bf16.mxu0 0
    %1754 = vmatpush1.bf16.xpose.msra.mxu0 0
    %1755 = vmatprep.subr.bf16.mxu0 0
    %1756 = vmatpush1.bf16.xpose.msra.mxu0 0
    %1757 = vmatprep.subr.bf16.mxu0 0
    %1758 = vmatpush1.bf16.xpose.msra.mxu0 0
    %1759 = vmatprep.subr.bf16.mxu0 0
    %1760 = vmatpush1.bf16.xpose.msra.mxu0 0
    %1761 = vmatprep.subr.bf16.mxu0 0
    %1762 = vmatpush1.bf16.xpose.msra.mxu0 0
    %1763 = vmatprep.subr.bf16.mxu0 0
    %1764 = vmatpush1.bf16.xpose.msra.mxu0 0
    %1765 = vmatprep.subr.bf16.mxu0 0
    %1766 = vmatpush1.bf16.xpose.msra.mxu0 0
    %1767 = vmatprep.subr.bf16.mxu0 0
    %1768 = vmatpush1.bf16.xpose.msra.mxu0 0
    %1769 = vmatprep.subr.bf16.mxu0 0
    %1770 = vmatpush1.bf16.xpose.msra.mxu0 0
    %1771 = vmatprep.subr.bf16.mxu0 0
    %1772 = vmatpush1.bf16.xpose.msra.mxu0 0
    %1773 = vmatprep.subr.bf16.mxu0 0
    %1774 = vmatpush1.bf16.xpose.msra.mxu0 0
    %1775 = vmatprep.subr.bf16.mxu0 0
    %1776 = vmatpush1.bf16.xpose.msra.mxu0 0
    %1777 = vmatprep.mubr.bf16.mxu0 0
    %1778 = vmatmul.mubr.bf16.gmra.mrb[0].mxu0 %v1740
    %v1779 = vpop.f32.mrb[0].mxu0
    %v1780 = vadd.f32 0.0, %v1779
    %v1781 = vpop.f32.mrb[0].mxu0
    %v1782 = vpop.f32.mrb[0].mxu0
    %v1783 = vpop.f32.mrb[0].mxu0
    %1784 = vdwg.mxu0
    %v1786 = vsel %vm663, %v1387, 0
    %v1789 = vsel %vm663, %v1539, 0
    %1791 = vmatprep.subr.bf16.mxu0 0
    %1792 = vmatpush1.bf16.xpose.msra.mxu0 %v1789
    %1793 = vmatprep.subr.bf16.mxu0 0
    %1794 = vmatpush1.bf16.xpose.msra.mxu0 0
    %1795 = vmatprep.subr.bf16.mxu0 0
    %1796 = vmatpush1.bf16.xpose.msra.mxu0 0
    %1797 = vmatprep.subr.bf16.mxu0 0
    %1798 = vmatpush1.bf16.xpose.msra.mxu0 0
    %1799 = vmatprep.subr.bf16.mxu0 0
    %1800 = vmatpush1.bf16.xpose.msra.mxu0 0
    %1801 = vmatprep.subr.bf16.mxu0 0
    %1802 = vmatpush1.bf16.xpose.msra.mxu0 0
    %1803 = vmatprep.subr.bf16.mxu0 0
    %1804 = vmatpush1.bf16.xpose.msra.mxu0 0
    %1805 = vmatprep.subr.bf16.mxu0 0
    %1806 = vmatpush1.bf16.xpose.msra.mxu0 0
    %1807 = vmatprep.subr.bf16.mxu0 0
    %1808 = vmatpush1.bf16.xpose.msra.mxu0 0
    %1809 = vmatprep.subr.bf16.mxu0 0
    %1810 = vmatpush1.bf16.xpose.msra.mxu0 0
    %1811 = vmatprep.subr.bf16.mxu0 0
    %1812 = vmatpush1.bf16.xpose.msra.mxu0 0
    %1813 = vmatprep.subr.bf16.mxu0 0
    %1814 = vmatpush1.bf16.xpose.msra.mxu0 0
    %1815 = vmatprep.subr.bf16.mxu0 0
    %1816 = vmatpush1.bf16.xpose.msra.mxu0 0
    %1817 = vmatprep.subr.bf16.mxu0 0
    %1818 = vmatpush1.bf16.xpose.msra.mxu0 0
    %1819 = vmatprep.subr.bf16.mxu0 0
    %1820 = vmatpush1.bf16.xpose.msra.mxu0 0
    %1821 = vmatprep.subr.bf16.mxu0 0
    %1822 = vmatpush1.bf16.xpose.msra.mxu0 0
    %1823 = vmatprep.mubr.bf16.mxu0 0
    %1824 = vmatmul.mubr.bf16.gmra.mrb[0].mxu0 %v1786
    %v1825 = vpop.f32.mrb[0].mxu0
    %v1826 = vadd.f32 0.0, %v1825
    %v1827 = vpop.f32.mrb[0].mxu0
    %v1828 = vpop.f32.mrb[0].mxu0
    %v1829 = vpop.f32.mrb[0].mxu0
    %1830 = vdwg.mxu0
    %v1832 = vsel %vm663, %v1388, 0
    %v1835 = vsel %vm663, %v1540, 0
    %1837 = vmatprep.subr.bf16.mxu0 0
    %1838 = vmatpush1.bf16.xpose.msra.mxu0 %v1835
    %1839 = vmatprep.subr.bf16.mxu0 0
    %1840 = vmatpush1.bf16.xpose.msra.mxu0 0
    %1841 = vmatprep.subr.bf16.mxu0 0
    %1842 = vmatpush1.bf16.xpose.msra.mxu0 0
    %1843 = vmatprep.subr.bf16.mxu0 0
    %1844 = vmatpush1.bf16.xpose.msra.mxu0 0
    %1845 = vmatprep.subr.bf16.mxu0 0
    %1846 = vmatpush1.bf16.xpose.msra.mxu0 0
    %1847 = vmatprep.subr.bf16.mxu0 0
    %1848 = vmatpush1.bf16.xpose.msra.mxu0 0
    %1849 = vmatprep.subr.bf16.mxu0 0
    %1850 = vmatpush1.bf16.xpose.msra.mxu0 0
    %1851 = vmatprep.subr.bf16.mxu0 0
    %1852 = vmatpush1.bf16.xpose.msra.mxu0 0
    %1853 = vmatprep.subr.bf16.mxu0 0
    %1854 = vmatpush1.bf16.xpose.msra.mxu0 0
    %1855 = vmatprep.subr.bf16.mxu0 0
    %1856 = vmatpush1.bf16.xpose.msra.mxu0 0
    %1857 = vmatprep.subr.bf16.mxu0 0
    %1858 = vmatpush1.bf16.xpose.msra.mxu0 0
    %1859 = vmatprep.subr.bf16.mxu0 0
    %1860 = vmatpush1.bf16.xpose.msra.mxu0 0
    %1861 = vmatprep.subr.bf16.mxu0 0
    %1862 = vmatpush1.bf16.xpose.msra.mxu0 0
    %1863 = vmatprep.subr.bf16.mxu0 0
    %1864 = vmatpush1.bf16.xpose.msra.mxu0 0
    %1865 = vmatprep.subr.bf16.mxu0 0
    %1866 = vmatpush1.bf16.xpose.msra.mxu0 0
    %1867 = vmatprep.subr.bf16.mxu0 0
    %1868 = vmatpush1.bf16.xpose.msra.mxu0 0
    %1869 = vmatprep.mubr.bf16.mxu0 0
    %1870 = vmatmul.mubr.bf16.gmra.mrb[0].mxu0 %v1832
    %v1871 = vpop.f32.mrb[0].mxu0
    %v1872 = vadd.f32 0.0, %v1871
    %v1873 = vpop.f32.mrb[0].mxu0
    %v1874 = vpop.f32.mrb[0].mxu0
    %v1875 = vpop.f32.mrb[0].mxu0
    %1876 = vdwg.mxu0
    %v1877 = vmul.f32 %v1734, 0.35355338
    %v1878 = vmul.f32 %v1780, 0.35355338
    %v1879 = vmul.f32 %v1826, 0.35355338
    %v1880 = vmul.f32 %v1872, 0.35355338
    %v1881 = vsel %vm663, %v1877, -inf
    %1882 = vmax.xlane.f32.xlu0 %v1881
    %v1883 = vpop.xlane.xlu0 %1882
    %v1884 = vsel %vm663, %v1878, -inf
    %1885 = vmax.xlane.f32.xlu0 %v1884
    %v1886 = vpop.xlane.xlu0 %1885
    %v1887 = vsel %vm663, %v1879, -inf
    %1888 = vmax.xlane.f32.xlu0 %v1887
    %v1889 = vpop.xlane.xlu0 %1888
    %v1890 = vsel %vm663, %v1880, -inf
    %1891 = vmax.xlane.f32.xlu0 %v1890
    %v1892 = vpop.xlane.xlu0 %1891
    %v1893 = vsub.f32 %v1877, %v1883
    %v1894 = vsub.f32 %v1878, %v1886
    %v1895 = vsub.f32 %v1879, %v1889
    %v1896 = vsub.f32 %v1880, %v1892
    %v1897 = vmul.f32 %v1893, 1.442695
    %v1898 = vpow.pop %v1897
    %v1899 = vmul.f32 %v1894, 1.442695
    %v1900 = vpow.pop %v1899
    %v1901 = vmul.f32 %v1895, 1.442695
    %v1902 = vpow.pop %v1901
    %v1903 = vmul.f32 %v1896, 1.442695
    %v1904 = vpow.pop %v1903
    %v1905 = vsel %vm663, %v1898, 0.0
    %1906 = vadd.xlane.f32.xlu0 %v1905
    %v1907 = vpop.xlane.xlu0 %1906
    %v1908 = vsel %vm663, %v1900, 0.0
    %1909 = vadd.xlane.f32.xlu0 %v1908
    %v1910 = vpop.xlane.xlu0 %1909
    %v1911 = vsel %vm663, %v1902, 0.0
    %1912 = vadd.xlane.f32.xlu0 %v1911
    %v1913 = vpop.xlane.xlu0 %1912
    %v1914 = vsel %vm663, %v1904, 0.0
    %1915 = vadd.xlane.f32.xlu0 %v1914
    %v1916 = vpop.xlane.xlu0 %1915
    %v1917 = vrcp.pop %v1907
    %v1918 = vrcp.pop %v1910
    %v1919 = vrcp.pop %v1913
    %v1920 = vrcp.pop %v1916
    %v1921 = vpack.c.bf16 %v1898, %v1898
    %v1922 = vpack.c.bf16 %v1900, %v1900
    %v1923 = vpack.c.bf16 %v1902, %v1902
    %v1924 = vpack.c.bf16 %v1904, %v1904
    %v1926 = vsel %vm663, %v1921, 0
    %v1929 = vsel %vm899, %v1689, 0
    %1931 = vmatprep.subr.bf16.mxu0 0
    %1932 = vmatpush1.bf16.msra.mxu0 %v1929
    %1933 = vmatprep.subr.bf16.mxu0 0
    %1934 = vmatpush1.bf16.msra.mxu0 0
    %1935 = vmatprep.subr.bf16.mxu0 0
    %1936 = vmatpush1.bf16.msra.mxu0 0
    %1937 = vmatprep.subr.bf16.mxu0 0
    %1938 = vmatpush1.bf16.msra.mxu0 0
    %1939 = vmatprep.subr.bf16.mxu0 0
    %1940 = vmatpush1.bf16.msra.mxu0 0
    %1941 = vmatprep.subr.bf16.mxu0 0
    %1942 = vmatpush1.bf16.msra.mxu0 0
    %1943 = vmatprep.subr.bf16.mxu0 0
    %1944 = vmatpush1.bf16.msra.mxu0 0
    %1945 = vmatprep.subr.bf16.mxu0 0
    %1946 = vmatpush1.bf16.msra.mxu0 0
    %1947 = vmatprep.subr.bf16.mxu0 0
    %1948 = vmatpush1.bf16.msra.mxu0 0
    %1949 = vmatprep.subr.bf16.mxu0 0
    %1950 = vmatpush1.bf16.msra.mxu0 0
    %1951 = vmatprep.subr.bf16.mxu0 0
    %1952 = vmatpush1.bf16.msra.mxu0 0
    %1953 = vmatprep.subr.bf16.mxu0 0
    %1954 = vmatpush1.bf16.msra.mxu0 0
    %1955 = vmatprep.subr.bf16.mxu0 0
    %1956 = vmatpush1.bf16.msra.mxu0 0
    %1957 = vmatprep.subr.bf16.mxu0 0
    %1958 = vmatpush1.bf16.msra.mxu0 0
    %1959 = vmatprep.subr.bf16.mxu0 0
    %1960 = vmatpush1.bf16.msra.mxu0 0
    %1961 = vmatprep.subr.bf16.mxu0 0
    %1962 = vmatpush1.bf16.msra.mxu0 0
    %1963 = vmatprep.mubr.bf16.mxu0 0
    %1964 = vmatmul.mubr.bf16.gmra.mrb[0].mxu0 %v1926
    %v1965 = vpop.f32.mrb[0].mxu0
    %v1966 = vadd.f32 0.0, %v1965
    %v1967 = vpop.f32.mrb[0].mxu0
    %v1968 = vpop.f32.mrb[0].mxu0
    %v1969 = vpop.f32.mrb[0].mxu0
    %1970 = vdwg.mxu0
    %v1972 = vsel %vm663, %v1922, 0
    %v1975 = vsel %vm899, %v1690, 0
    %1977 = vmatprep.subr.bf16.mxu0 0
    %1978 = vmatpush1.bf16.msra.mxu0 %v1975
    %1979 = vmatprep.subr.bf16.mxu0 0
    %1980 = vmatpush1.bf16.msra.mxu0 0
    %1981 = vmatprep.subr.bf16.mxu0 0
    %1982 = vmatpush1.bf16.msra.mxu0 0
    %1983 = vmatprep.subr.bf16.mxu0 0
    %1984 = vmatpush1.bf16.msra.mxu0 0
    %1985 = vmatprep.subr.bf16.mxu0 0
    %1986 = vmatpush1.bf16.msra.mxu0 0
    %1987 = vmatprep.subr.bf16.mxu0 0
    %1988 = vmatpush1.bf16.msra.mxu0 0
    %1989 = vmatprep.subr.bf16.mxu0 0
    %1990 = vmatpush1.bf16.msra.mxu0 0
    %1991 = vmatprep.subr.bf16.mxu0 0
    %1992 = vmatpush1.bf16.msra.mxu0 0
    %1993 = vmatprep.subr.bf16.mxu0 0
    %1994 = vmatpush1.bf16.msra.mxu0 0
    %1995 = vmatprep.subr.bf16.mxu0 0
    %1996 = vmatpush1.bf16.msra.mxu0 0
    %1997 = vmatprep.subr.bf16.mxu0 0
    %1998 = vmatpush1.bf16.msra.mxu0 0
    %1999 = vmatprep.subr.bf16.mxu0 0
    %2000 = vmatpush1.bf16.msra.mxu0 0
    %2001 = vmatprep.subr.bf16.mxu0 0
    %2002 = vmatpush1.bf16.msra.mxu0 0
    %2003 = vmatprep.subr.bf16.mxu0 0
    %2004 = vmatpush1.bf16.msra.mxu0 0
    %2005 = vmatprep.subr.bf16.mxu0 0
    %2006 = vmatpush1.bf16.msra.mxu0 0
    %2007 = vmatprep.subr.bf16.mxu0 0
    %2008 = vmatpush1.bf16.msra.mxu0 0
    %2009 = vmatprep.mubr.bf16.mxu0 0
    %2010 = vmatmul.mubr.bf16.gmra.mrb[0].mxu0 %v1972
    %v2011 = vpop.f32.mrb[0].mxu0
    %v2012 = vadd.f32 0.0, %v2011
    %v2013 = vpop.f32.mrb[0].mxu0
    %v2014 = vpop.f32.mrb[0].mxu0
    %v2015 = vpop.f32.mrb[0].mxu0
    %2016 = vdwg.mxu0
    %v2018 = vsel %vm663, %v1923, 0
    %v2021 = vsel %vm899, %v1691, 0
    %2023 = vmatprep.subr.bf16.mxu0 0
    %2024 = vmatpush1.bf16.msra.mxu0 %v2021
    %2025 = vmatprep.subr.bf16.mxu0 0
    %2026 = vmatpush1.bf16.msra.mxu0 0
    %2027 = vmatprep.subr.bf16.mxu0 0
    %2028 = vmatpush1.bf16.msra.mxu0 0
    %2029 = vmatprep.subr.bf16.mxu0 0
    %2030 = vmatpush1.bf16.msra.mxu0 0
    %2031 = vmatprep.subr.bf16.mxu0 0
    %2032 = vmatpush1.bf16.msra.mxu0 0
    %2033 = vmatprep.subr.bf16.mxu0 0
    %2034 = vmatpush1.bf16.msra.mxu0 0
    %2035 = vmatprep.subr.bf16.mxu0 0
    %2036 = vmatpush1.bf16.msra.mxu0 0
    %2037 = vmatprep.subr.bf16.mxu0 0
    %2038 = vmatpush1.bf16.msra.mxu0 0
    %2039 = vmatprep.subr.bf16.mxu0 0
    %2040 = vmatpush1.bf16.msra.mxu0 0
    %2041 = vmatprep.subr.bf16.mxu0 0
    %2042 = vmatpush1.bf16.msra.mxu0 0
    %2043 = vmatprep.subr.bf16.mxu0 0
    %2044 = vmatpush1.bf16.msra.mxu0 0
    %2045 = vmatprep.subr.bf16.mxu0 0
    %2046 = vmatpush1.bf16.msra.mxu0 0
    %2047 = vmatprep.subr.bf16.mxu0 0
    %2048 = vmatpush1.bf16.msra.mxu0 0
    %2049 = vmatprep.subr.bf16.mxu0 0
    %2050 = vmatpush1.bf16.msra.mxu0 0
    %2051 = vmatprep.subr.bf16.mxu0 0
    %2052 = vmatpush1.bf16.msra.mxu0 0
    %2053 = vmatprep.subr.bf16.mxu0 0
    %2054 = vmatpush1.bf16.msra.mxu0 0
    %2055 = vmatprep.mubr.bf16.mxu0 0
    %2056 = vmatmul.mubr.bf16.gmra.mrb[0].mxu0 %v2018
    %v2057 = vpop.f32.mrb[0].mxu0
    %v2058 = vadd.f32 0.0, %v2057
    %v2059 = vpop.f32.mrb[0].mxu0
    %v2060 = vpop.f32.mrb[0].mxu0
    %v2061 = vpop.f32.mrb[0].mxu0
    %2062 = vdwg.mxu0
    %v2064 = vsel %vm663, %v1924, 0
    %v2067 = vsel %vm899, %v1692, 0
    %2069 = vmatprep.subr.bf16.mxu0 0
    %2070 = vmatpush1.bf16.msra.mxu0 %v2067
    %2071 = vmatprep.subr.bf16.mxu0 0
    %2072 = vmatpush1.bf16.msra.mxu0 0
    %2073 = vmatprep.subr.bf16.mxu0 0
    %2074 = vmatpush1.bf16.msra.mxu0 0
    %2075 = vmatprep.subr.bf16.mxu0 0
    %2076 = vmatpush1.bf16.msra.mxu0 0
    %2077 = vmatprep.subr.bf16.mxu0 0
    %2078 = vmatpush1.bf16.msra.mxu0 0
    %2079 = vmatprep.subr.bf16.mxu0 0
    %2080 = vmatpush1.bf16.msra.mxu0 0
    %2081 = vmatprep.subr.bf16.mxu0 0
    %2082 = vmatpush1.bf16.msra.mxu0 0
    %2083 = vmatprep.subr.bf16.mxu0 0
    %2084 = vmatpush1.bf16.msra.mxu0 0
    %2085 = vmatprep.subr.bf16.mxu0 0
    %2086 = vmatpush1.bf16.msra.mxu0 0
    %2087 = vmatprep.subr.bf16.mxu0 0
    %2088 = vmatpush1.bf16.msra.mxu0 0
    %2089 = vmatprep.subr.bf16.mxu0 0
    %2090 = vmatpush1.bf16.msra.mxu0 0
    %2091 = vmatprep.subr.bf16.mxu0 0
    %2092 = vmatpush1.bf16.msra.mxu0 0
    %2093 = vmatprep.subr.bf16.mxu0 0
    %2094 = vmatpush1.bf16.msra.mxu0 0
    %2095 = vmatprep.subr.bf16.mxu0 0
    %2096 = vmatpush1.bf16.msra.mxu0 0
    %2097 = vmatprep.subr.bf16.mxu0 0
    %2098 = vmatpush1.bf16.msra.mxu0 0
    %2099 = vmatprep.subr.bf16.mxu0 0
    %2100 = vmatpush1.bf16.msra.mxu0 0
    %2101 = vmatprep.mubr.bf16.mxu0 0
    %2102 = vmatmul.mubr.bf16.gmra.mrb[0].mxu0 %v2064
    %v2103 = vpop.f32.mrb[0].mxu0
    %v2104 = vadd.f32 0.0, %v2103
    %v2105 = vpop.f32.mrb[0].mxu0
    %v2106 = vpop.f32.mrb[0].mxu0
    %v2107 = vpop.f32.mrb[0].mxu0
    %2108 = vdwg.mxu0
    %v2109 = vmul.f32 %v1966, %v1917
    %v2110 = vmul.f32 %v2012, %v1918
    %v2111 = vmul.f32 %v2058, %v1919
    %v2112 = vmul.f32 %v2104, %v1920
    %v2113 = vcombine.low %v2109, %v2111
    %v2114 = vcombine.high %v2109, %v2111
    %v2116 = vunpack.c.l.s4 1983009808
    %v2117 = vunpack.c.0.s8 %v2116
    %v2118 = vlaneseq
    %v2119 = vshrl.u32 %v2118, 7
    %v2120 = vsub.s32 %v2117, %v2119
    %v2121 = vrot.slane %v2113, %v2120
    %v2123 = vunpack.c.l.s4 1983009808
    %v2124 = vunpack.c.0.s8 %v2123
    %v2125 = vlaneseq
    %v2126 = vshrl.u32 %v2125, 7
    %v2127 = vsub.s32 %v2124, %v2126
    %v2128 = vrot.slane %v2114, %v2127
    %v2129 = vcombine.low %v2110, %v2112
    %v2130 = vcombine.high %v2110, %v2112
    %v2132 = vunpack.c.l.s4 1983009808
    %v2133 = vunpack.c.0.s8 %v2132
    %v2134 = vlaneseq
    %v2135 = vshrl.u32 %v2134, 7
    %v2136 = vsub.s32 %v2133, %v2135
    %v2137 = vrot.slane %v2129, %v2136
    %v2139 = vunpack.c.l.s4 1983009808
    %v2140 = vunpack.c.0.s8 %v2139
    %v2141 = vlaneseq
    %v2142 = vshrl.u32 %v2141, 7
    %v2143 = vsub.s32 %v2140, %v2142
    %v2144 = vrot.slane %v2130, %v2143
    %v2145 = vcombine.low %v2121, %v2137
    %v2146 = vcombine.high %v2121, %v2137
    %v2148 = vunpack.c.l.s4 1934713408
    %v2149 = vunpack.c.0.s8 %v2148
    %v2150 = vlaneseq
    %v2151 = vshrl.u32 %v2150, 7
    %v2152 = vsub.s32 %v2149, %v2151
    %v2153 = vrot.slane %v2145, %v2152
    %v2155 = vunpack.c.l.s4 1934713408
    %v2156 = vunpack.c.0.s8 %v2155
    %v2157 = vlaneseq
    %v2158 = vshrl.u32 %v2157, 7
    %v2159 = vsub.s32 %v2156, %v2158
    %v2160 = vrot.slane %v2146, %v2159
    %v2161 = vcombine.low %v2128, %v2144
    %v2162 = vcombine.high %v2128, %v2144
    %v2164 = vunpack.c.l.s4 1934713408
    %v2165 = vunpack.c.0.s8 %v2164
    %v2166 = vlaneseq
    %v2167 = vshrl.u32 %v2166, 7
    %v2168 = vsub.s32 %v2165, %v2167
    %v2169 = vrot.slane %v2161, %v2168
    %v2171 = vunpack.c.l.s4 1934713408
    %v2172 = vunpack.c.0.s8 %v2171
    %v2173 = vlaneseq
    %v2174 = vshrl.u32 %v2173, 7
    %v2175 = vsub.s32 %v2172, %v2174
    %v2176 = vrot.slane %v2162, %v2175
    %v2177 = vcombine.high %v2153, 0.0
    %v2178 = vcombine.high %v2160, 0.0
    %v2179 = vcombine.high %v2169, 0.0
    %v2180 = vcombine.high %v2176, 0.0
    %v2181 = vcombine.low %v2153, %v2160
    %v2183 = vunpack.c.l.s4 1983009808
    %v2184 = vunpack.c.0.s8 %v2183
    %v2185 = vlaneseq
    %v2186 = vshrl.u32 %v2185, 7
    %v2187 = vsub.s32 %v2184, %v2186
    %v2188 = vrot.slane %v2181, %v2187
    %v2189 = vcombine.low %v2177, %v2178
    %v2191 = vunpack.c.l.s4 1983009808
    %v2192 = vunpack.c.0.s8 %v2191
    %v2193 = vlaneseq
    %v2194 = vshrl.u32 %v2193, 7
    %v2195 = vsub.s32 %v2192, %v2194
    %v2196 = vrot.slane %v2189, %v2195
    %v2197 = vcombine.low %v2169, %v2176
    %v2199 = vunpack.c.l.s4 1983009808
    %v2200 = vunpack.c.0.s8 %v2199
    %v2201 = vlaneseq
    %v2202 = vshrl.u32 %v2201, 7
    %v2203 = vsub.s32 %v2200, %v2202
    %v2204 = vrot.slane %v2197, %v2203
    %v2205 = vcombine.low %v2179, %v2180
    %v2207 = vunpack.c.l.s4 1983009808
    %v2208 = vunpack.c.0.s8 %v2207
    %v2209 = vlaneseq
    %v2210 = vshrl.u32 %v2209, 7
    %v2211 = vsub.s32 %v2208, %v2210
    %v2212 = vrot.slane %v2205, %v2211
    %v2213 = vcombine.low %v2188, %v2196
    %v2214 = vcombine.high %v2188, %v2196
    %v2216 = vunpack.c.l.s4 1934713408
    %v2217 = vunpack.c.0.s8 %v2216
    %v2218 = vlaneseq
    %v2219 = vshrl.u32 %v2218, 7
    %v2220 = vsub.s32 %v2217, %v2219
    %v2221 = vrot.slane %v2213, %v2220
    %v2223 = vunpack.c.l.s4 1934713408
    %v2224 = vunpack.c.0.s8 %v2223
    %v2225 = vlaneseq
    %v2226 = vshrl.u32 %v2225, 7
    %v2227 = vsub.s32 %v2224, %v2226
    %v2228 = vrot.slane %v2214, %v2227
    %v2229 = vcombine.low %v2204, %v2212
    %v2230 = vcombine.high %v2204, %v2212
    %v2232 = vunpack.c.l.s4 1934713408
    %v2233 = vunpack.c.0.s8 %v2232
    %v2234 = vlaneseq
    %v2235 = vshrl.u32 %v2234, 7
    %v2236 = vsub.s32 %v2233, %v2235
    %v2237 = vrot.slane %v2229, %v2236
    %v2239 = vunpack.c.l.s4 1934713408
    %v2240 = vunpack.c.0.s8 %v2239
    %v2241 = vlaneseq
    %v2242 = vshrl.u32 %v2241, 7
    %v2243 = vsub.s32 %v2240, %v2242
    %v2244 = vrot.slane %v2230, %v2243
    %v2245 = vcombine.low %v2221, %v2237
    %v2246 = vcombine.high %v2221, %v2237
    %v2247 = vcombine.low %v2228, %v2244
    %v2248 = vcombine.high %v2228, %v2244
    %2250 = vrot.lane.b32.xlu0 %v2246, 8
    %v2251 = vpop.permute.xlu0 %2250
    %2254 = vrot.lane.b32.xlu0 %v2247, 16
    %v2255 = vpop.permute.xlu0 %2254
    %2258 = vrot.lane.b32.xlu0 %v2248, 24
    %v2259 = vpop.permute.xlu0 %2258
    %v2261 = vsel %vm663, %v2245, %v2251
    %v2262 = vsel %vm1234, %v2261, %v2255
    %v2263 = vsel %vm1236, %v2262, %v2259
    %2264 = vst.msk [vmem:[#allocation2 + $0x8] sm:$0xff] %vm97, %v2263
    %v2265 = vld [vmem:[#allocation2] sm:$0xff]
    %v2266 = vld [vmem:[#allocation2 + $0x8] sm:$0xff]
    %v2267 = vpack.c.bf16 %v2266, %v2265
    %v2268 = vld [vmem:[%s5] sm:$0xf]
    %v2269 = vld [vmem:[%s5 + $0x4] sm:$0xf]
    %v2270 = vld [vmem:[%s5 + $0x8] sm:$0xf]
    %v2271 = vld [vmem:[%s5 + $0xc] sm:$0xf]
    %v2276 = vunpack.c.l.b16 %v2268
    %v2277 = vunpack.c.l.b16 %v2269
    %v2278 = vunpack.c.l.b16 %v2270
    %v2279 = vunpack.c.l.b16 %v2271
    %v2280 = vpack.c.b16 %v2277, %v2276
    %v2281 = vpack.c.b16 %v2279, %v2278
    %v2285 = vsel %vm97, %v2267, 0
    %2287 = vmatprep.subr.bf16.mxu0 0
    %2288 = vmatpush1.bf16.msra.mxu0 %v2280
    %2289 = vmatprep.subr.bf16.mxu0 0
    %2290 = vmatpush1.bf16.msra.mxu0 %v2281
    %2291 = vmatprep.subr.bf16.mxu0 0
    %2292 = vmatpush1.bf16.msra.mxu0 0
    %2293 = vmatprep.subr.bf16.mxu0 0
    %2294 = vmatpush1.bf16.msra.mxu0 0
    %2295 = vmatprep.subr.bf16.mxu0 0
    %2296 = vmatpush1.bf16.msra.mxu0 0
    %2297 = vmatprep.subr.bf16.mxu0 0
    %2298 = vmatpush1.bf16.msra.mxu0 0
    %2299 = vmatprep.subr.bf16.mxu0 0
    %2300 = vmatpush1.bf16.msra.mxu0 0
    %2301 = vmatprep.subr.bf16.mxu0 0
    %2302 = vmatpush1.bf16.msra.mxu0 0
    %2303 = vmatprep.subr.bf16.mxu0 0
    %2304 = vmatpush1.bf16.msra.mxu0 0
    %2305 = vmatprep.subr.bf16.mxu0 0
    %2306 = vmatpush1.bf16.msra.mxu0 0
    %2307 = vmatprep.subr.bf16.mxu0 0
    %2308 = vmatpush1.bf16.msra.mxu0 0
    %2309 = vmatprep.subr.bf16.mxu0 0
    %2310 = vmatpush1.bf16.msra.mxu0 0
    %2311 = vmatprep.subr.bf16.mxu0 0
    %2312 = vmatpush1.bf16.msra.mxu0 0
    %2313 = vmatprep.subr.bf16.mxu0 0
    %2314 = vmatpush1.bf16.msra.mxu0 0
    %2315 = vmatprep.subr.bf16.mxu0 0
    %2316 = vmatpush1.bf16.msra.mxu0 0
    %2317 = vmatprep.subr.bf16.mxu0 0
    %2318 = vmatpush1.bf16.msra.mxu0 0
    %2319 = vmatprep.mubr.bf16.mxu0 0
    %2320 = vmatmul.mubr.bf16.gmra.mrb[0].mxu0 %v2285
    %v2321 = vpop.f32.mrb[0].mxu0
    %v2322 = vadd.f32 0.0, %v2321
    %v2323 = vpop.f32.mrb[0].mxu0
    %v2324 = vpop.f32.mrb[0].mxu0
    %v2325 = vadd.f32 0.0, %v2324
    %v2326 = vpop.f32.mrb[0].mxu0
    %2327 = vdwg.mxu0
    %v2328 = vadd.f32 %v93, %v2322
    %v2329 = vadd.f32 %v94, %v2325
    %v2330 = vld [vmem:[#allocation6] sm:$0x1]
    %v2332 = vlaneseq
    %v2333 = vshrl.u32 %v2332, 7
    %v2334 = vsub.s32 0, %v2333
    %v2335 = vrot.slane %v2330, %v2334
    %v2337 = vadd.f32 %v2328, %v2335
    %v2338 = vadd.f32 %v2329, %v2335
    %v2339 = vld [vmem:[#allocation8] sm:$0x1]
    %v2340 = vld [vmem:[#allocation9] sm:$0x1]
    %v2341 = vsel %vm97, %v2337, 0.0
    %2342 = vadd.xlane.f32.xlu0 %v2341
    %v2343 = vpop.xlane.xlu0 %2342
    %v2344 = vsel %vm97, %v2338, 0.0
    %2345 = vadd.xlane.f32.xlu0 %v2344
    %v2346 = vpop.xlane.xlu0 %2345
    %v2347 = vmul.f32 %v2343, %v104
    %v2348 = vmul.f32 %v2346, %v104
    %v2349 = vsub.f32 %v2337, %v2347
    %v2350 = vsub.f32 %v2338, %v2348
    %v2351 = vmul.f32 %v2349, %v2349
    %v2352 = vmul.f32 %v2350, %v2350
    %v2353 = vsel %vm97, %v2351, 0.0
    %2354 = vadd.xlane.f32.xlu0 %v2353
    %v2355 = vpop.xlane.xlu0 %2354
    %v2356 = vsel %vm97, %v2352, 0.0
    %2357 = vadd.xlane.f32.xlu0 %v2356
    %v2358 = vpop.xlane.xlu0 %2357
    %v2359 = vmul.f32 %v2355, %v104
    %v2360 = vmul.f32 %v2358, %v104
    %v2361 = vadd.f32 %v2359, 1e-05
    %v2362 = vadd.f32 %v2360, 1e-05
    %v2363 = vrsqrt.pop %v2361
    %v2364 = vrsqrt.pop %v2362
    %v2365 = vmul.f32 %v2349, %v2363
    %v2366 = vmul.f32 %v2350, %v2364
    %v2368 = vlaneseq
    %v2369 = vshrl.u32 %v2368, 7
    %v2370 = vsub.s32 0, %v2369
    %v2371 = vrot.slane %v2339, %v2370
    %v2373 = vmul.f32 %v2365, %v2371
    %v2374 = vmul.f32 %v2366, %v2371
    %v2376 = vlaneseq
    %v2377 = vshrl.u32 %v2376, 7
    %v2378 = vsub.s32 0, %v2377
    %v2379 = vrot.slane %v2340, %v2378
    %v2381 = vadd.f32 %v2373, %v2379
    %v2382 = vadd.f32 %v2374, %v2379
    %v2383 = vpack.c.bf16 %v2382, %v2381
    %v2384 = vld [vmem:[%s12] sm:$0x1]
    %v2386 = vlaneseq
    %v2387 = vshrl.u32 %v2386, 7
    %v2388 = vsub.s32 0, %v2387
    %v2389 = vrot.slane %v2384, %v2388
    %v2391 = vadd.f32 %v2337, %v2389
    %v2392 = vadd.f32 %v2338, %v2389
    %v2393 = vld [vmem:[%s9] sm:$0xf]
    %v2394 = vld [vmem:[%s9 + $0x4] sm:$0xf]
    %v2395 = vld [vmem:[%s9 + $0x8] sm:$0xf]
    %v2396 = vld [vmem:[%s9 + $0xc] sm:$0xf]
    %v2397 = vld [vmem:[%s10] sm:$0x1]
    %v2399 = vlaneseq
    %v2400 = vshrl.u32 %v2399, 7
    %v2401 = vsub.s32 0, %v2400
    %v2402 = vrot.slane %v2397, %v2401
    %v2408 = vunpack.c.l.b16 %v2393
    %v2409 = vunpack.c.l.b16 %v2394
    %v2410 = vunpack.c.l.b16 %v2395
    %v2411 = vunpack.c.l.b16 %v2396
    %v2412 = vpack.c.b16 %v2409, %v2408
    %v2413 = vpack.c.b16 %v2411, %v2410
    %v2417 = vsel %vm97, %v2383, 0
    %2419 = vmatprep.subr.bf16.mxu0 0
    %2420 = vmatpush1.bf16.msra.mxu0 %v2412
    %2421 = vmatprep.subr.bf16.mxu0 0
    %2422 = vmatpush1.bf16.msra.mxu0 %v2413
    %2423 = vmatprep.subr.bf16.mxu0 0
    %2424 = vmatpush1.bf16.msra.mxu0 0
    %2425 = vmatprep.subr.bf16.mxu0 0
    %2426 = vmatpush1.bf16.msra.mxu0 0
    %2427 = vmatprep.subr.bf16.mxu0 0
    %2428 = vmatpush1.bf16.msra.mxu0 0
    %2429 = vmatprep.subr.bf16.mxu0 0
    %2430 = vmatpush1.bf16.msra.mxu0 0
    %2431 = vmatprep.subr.bf16.mxu0 0
    %2432 = vmatpush1.bf16.msra.mxu0 0
    %2433 = vmatprep.subr.bf16.mxu0 0
    %2434 = vmatpush1.bf16.msra.mxu0 0
    %2435 = vmatprep.subr.bf16.mxu0 0
    %2436 = vmatpush1.bf16.msra.mxu0 0
    %2437 = vmatprep.subr.bf16.mxu0 0
    %2438 = vmatpush1.bf16.msra.mxu0 0
    %2439 = vmatprep.subr.bf16.mxu0 0
    %2440 = vmatpush1.bf16.msra.mxu0 0
    %2441 = vmatprep.subr.bf16.mxu0 0
    %2442 = vmatpush1.bf16.msra.mxu0 0
    %2443 = vmatprep.subr.bf16.mxu0 0
    %2444 = vmatpush1.bf16.msra.mxu0 0
    %2445 = vmatprep.subr.bf16.mxu0 0
    %2446 = vmatpush1.bf16.msra.mxu0 0
    %2447 = vmatprep.subr.bf16.mxu0 0
    %2448 = vmatpush1.bf16.msra.mxu0 0
    %2449 = vmatprep.subr.bf16.mxu0 0
    %2450 = vmatpush1.bf16.msra.mxu0 0
    %2451 = vmatprep.mubr.bf16.mxu0 0
    %2452 = vmatmul.mubr.bf16.gmra.mrb[0].mxu0 %v2417
    %v2453 = vpop.f32.mrb[0].mxu0
    %v2454 = vadd.f32 %v2402, %v2453
    %v2455 = vpop.f32.mrb[0].mxu0
    %v2456 = vpop.f32.mrb[0].mxu0
    %v2457 = vadd.f32 %v2402, %v2456
    %v2458 = vpop.f32.mrb[0].mxu0
    %2459 = vdwg.mxu0
    %v2460 = vmul.f32 %v2454, 0.5
    %v2461 = vmul.f32 %v2457, 0.5
    %v2462 = vmul.f32 %v2454, 0.70710677
    %v2463 = vmul.f32 %v2457, 0.70710677
    %v2464 = verf.f32.pop %v2462
    %v2465 = verf.f32.pop %v2463
    %v2466 = vadd.f32 %v2464, 1.0
    %v2467 = vadd.f32 %v2465, 1.0
    %v2468 = vmul.f32 %v2460, %v2466
    %v2469 = vmul.f32 %v2461, %v2467
    %v2470 = vpack.c.bf16 %v2469, %v2468
    %v2471 = vld [vmem:[%s11] sm:$0xf]
    %v2472 = vld [vmem:[%s11 + $0x4] sm:$0xf]
    %v2473 = vld [vmem:[%s11 + $0x8] sm:$0xf]
    %v2474 = vld [vmem:[%s11 + $0xc] sm:$0xf]
    %v2475 = vld [vmem:[%s11 + $0x10] sm:$0xf]
    %v2476 = vld [vmem:[%s11 + $0x14] sm:$0xf]
    %v2477 = vld [vmem:[%s11 + $0x18] sm:$0xf]
    %v2478 = vld [vmem:[%s11 + $0x1c] sm:$0xf]
    %v2487 = vunpack.c.l.b16 %v2471
    %v2488 = vunpack.c.l.b16 %v2472
    %v2489 = vunpack.c.l.b16 %v2473
    %v2490 = vunpack.c.l.b16 %v2474
    %v2491 = vunpack.c.l.b16 %v2475
    %v2492 = vunpack.c.l.b16 %v2476
    %v2493 = vunpack.c.l.b16 %v2477
    %v2494 = vunpack.c.l.b16 %v2478
    %v2495 = vpack.c.b16 %v2488, %v2487
    %v2496 = vpack.c.b16 %v2490, %v2489
    %v2497 = vpack.c.b16 %v2492, %v2491
    %v2498 = vpack.c.b16 %v2494, %v2493
    %vm2503 = vcmask 523264
    %v2505 = vsel %vm2503, %v2470, 0
    %2507 = vmatprep.subr.bf16.mxu0 0
    %2508 = vmatpush1.bf16.msra.mxu0 %v2495
    %2509 = vmatprep.subr.bf16.mxu0 0
    %2510 = vmatpush1.bf16.msra.mxu0 %v2496
    %2511 = vmatprep.subr.bf16.mxu0 0
    %2512 = vmatpush1.bf16.msra.mxu0 %v2497
    %2513 = vmatprep.subr.bf16.mxu0 0
    %2514 = vmatpush1.bf16.msra.mxu0 %v2498
    %2515 = vmatprep.subr.bf16.mxu0 0
    %2516 = vmatpush1.bf16.msra.mxu0 0
    %2517 = vmatprep.subr.bf16.mxu0 0
    %2518 = vmatpush1.bf16.msra.mxu0 0
    %2519 = vmatprep.subr.bf16.mxu0 0
    %2520 = vmatpush1.bf16.msra.mxu0 0
    %2521 = vmatprep.subr.bf16.mxu0 0
    %2522 = vmatpush1.bf16.msra.mxu0 0
    %2523 = vmatprep.subr.bf16.mxu0 0
    %2524 = vmatpush1.bf16.msra.mxu0 0
    %2525 = vmatprep.subr.bf16.mxu0 0
    %2526 = vmatpush1.bf16.msra.mxu0 0
    %2527 = vmatprep.subr.bf16.mxu0 0
    %2528 = vmatpush1.bf16.msra.mxu0 0
    %2529 = vmatprep.subr.bf16.mxu0 0
    %2530 = vmatpush1.bf16.msra.mxu0 0
    %2531 = vmatprep.subr.bf16.mxu0 0
    %2532 = vmatpush1.bf16.msra.mxu0 0
    %2533 = vmatprep.subr.bf16.mxu0 0
    %2534 = vmatpush1.bf16.msra.mxu0 0
    %2535 = vmatprep.subr.bf16.mxu0 0
    %2536 = vmatpush1.bf16.msra.mxu0 0
    %2537 = vmatprep.subr.bf16.mxu0 0
    %2538 = vmatpush1.bf16.msra.mxu0 0
    %2539 = vmatprep.mubr.bf16.mxu0 0
    %2540 = vmatmul.mubr.bf16.gmra.mrb[0].mxu0 %v2505
    %v2541 = vpop.f32.mrb[0].mxu0
    %v2542 = vadd.f32 0.0, %v2541
    %v2543 = vpop.f32.mrb[0].mxu0
    %v2544 = vpop.f32.mrb[0].mxu0
    %v2545 = vadd.f32 0.0, %v2544
    %v2546 = vpop.f32.mrb[0].mxu0
    %2547 = vdwg.mxu0
    %v2548 = vadd.f32 %v2391, %v2542
    %v2549 = vadd.f32 %v2392, %v2545
    %2550 = vst.msk [vmem:[#allocation11] sm:$0xff] %vm97, %v2548
    %2551 = vst.msk [vmem:[#allocation11 + $0x8] sm:$0xff] %vm97, %v2549
    // Predicated region
    $region70: #{tpu_custom_call.1} parent=1 // pred_check
      _
    $region71: #{tpu_custom_call.1} parent=1 // pred_check_branch
      %2553 = sbr.rel (0) target = $region73
    $region72: #{tpu_custom_call.1} parent=1 // pred_region
      %s2555 = ssub.s32 256, 256
      %2556 = vsyncadd [#allocation5], %s2555
      %s2557 = sshll.u32 [#allocation11], 4
      %s2558 = int_to_ptr.vmem [resolvable:$true] %s2557
      %2563 = dma.vmem_to_hbm [thread:$0]  %s2558, 256, %s13, [#allocation5], 128, 128, 8
    $region73: #{tpu_custom_call.1} parent=1 // pred_fallthru
      _
    // Predicated region
    $region74: #{tpu_custom_call.1} parent=1 // pred_check
      _
    $region75: #{tpu_custom_call.1} parent=1 // pred_check_branch
      %2565 = sbr.rel (0) target = $region77
    $region76: #{tpu_custom_call.1} parent=1 // pred_region
      %2566 = dma.done [#allocation5], 256
    $region77: #{tpu_custom_call.1} parent=1 // pred_fallthru
      _
    %2567 = vsyncpa [#allocation4], 1
    %2568 = vsyncpa [#allocation7], 1
    %2569 = vsyncpa [#allocation10], 1
    %2570 = vsyncpa [#allocation5], 1

</llo_original>
